<compile_context>
chip_gen: v6e
topology: v6e:2x2x1
jax: 0.10.0
libtpu: 0.0.40
codegen_flags: <defaults>
</compile_context>

<pallas_src>
import functools

import numpy as np

import jax
import jax.numpy as jnp
from jax.experimental import pallas as pl
from jax.experimental.pallas import tpu as pltpu


C_IN = 3
C_OUT = 3


def _make_tap_masks(H, W):
    """(9, H*W) f32 validity masks, row t = (dy+1)*3 + (dx+1).

    1.0 where the shifted source pixel lies inside the image, 0.0 where the
    conv's zero padding would have contributed.  Pure function of static
    shapes -> constant-folded by XLA, DMA'd to VMEM once (block index never
    changes across the grid, so Pallas does not re-copy it).
    """
    y = np.arange(H, dtype=np.int32)[:, None]
    x = np.arange(W, dtype=np.int32)[None, :]
    rows = []
    for dy in (-1, 0, 1):
        for dx in (-1, 0, 1):
            ok = (y + dy >= 0) & (y + dy < H) & (x + dx >= 0) & (x + dx < W)
            rows.append(np.broadcast_to(ok, (H, W)).reshape(-1))
    return np.stack(rows, axis=0).astype(np.float32)


def _images_per_step(n, hw):
    """Images per grid step: divides N, keeps the parallel axis >= 2 when the
    batch allows it (v7x megacore), and respects a VMEM/vreg budget."""
    vmem_cap = max(1, (8 * 1024 * 1024) // (2 * 4 * (C_IN + 2 * C_OUT) * hw))
    limit = max(1, min(n, 8, vmem_cap))
    best = 1
    for nb in range(1, limit + 1):
        if n % nb == 0 and (n // nb >= 2 or n == 1):
            best = nb
    return best


def _edge_kernel(x_ref, m_ref, w1_ref, b1_ref, w3_ref, b3_ref,
                 ex_ref, ey_ref, *, W):
    """One batch block per grid step.

    x_ref  : (NB, C_IN, H*W)   un-padded input planes, flattened (VMEM)
    m_ref  : (9, H*W)          per-tap border masks (VMEM)
    w1_ref : (C_OUT*C_IN,)     SMEM flattened 1x1 conv weights
    b1_ref : (C_OUT,)          SMEM 1x1 conv bias
    w3_ref : (C_OUT*C_IN*9,)   SMEM flattened 3x3 conv weights
    b3_ref : (C_OUT,)          SMEM 3x3 conv bias
    ex_ref : (NB, C_OUT, H*W)  1x1 conv interior (bias included)
    ey_ref : (NB, C_OUT, H*W)  3x3 conv output
    """
    nb = x_ref.shape[0]
    hw = x_ref.shape[2]

    for b in range(nb):
        # One load of all three channel planes of this image.
        xb = x_ref[b].astype(jnp.float32)                    # (C_IN, hw)
        xcs = [xb[ci:ci + 1, :] for ci in range(C_IN)]       # 3 x (1, hw)

        # f32 accumulators initialized with the biases.
        ex = [jnp.full((1, hw), b1_ref[co], jnp.float32) for co in range(C_OUT)]
        ey = [jnp.full((1, hw), b3_ref[co], jnp.float32) for co in range(C_OUT)]

        # ---- 1x1 conv interior: straight from the un-padded, aligned planes.
        for co in range(C_OUT):
            for ci in range(C_IN):
                ex[co] = ex[co] + w1_ref[co * C_IN + ci] * xcs[ci]

        # ---- 3x3 conv: one XLU lane-roll + one mask multiply per tap serves
        # all three input channels and is reused by all three output channels.
        for dy in (-1, 0, 1):
            for dx in (-1, 0, 1):
                t = (dy + 1) * 3 + (dx + 1)
                if dy == 0 and dx == 0:
                    sh = xcs                                  # center tap: no shift/mask
                else:
                    # shifted[i] = xflat[i + dy*W + dx]  (pltpu.roll == np.roll)
                    amt = (-(dy * W + dx)) % hw
                    rolled = pltpu.roll(xb, shift=amt, axis=1) * m_ref[t:t + 1, :]
                    sh = [rolled[ci:ci + 1, :] for ci in range(C_IN)]
                for co in range(C_OUT):
                    for ci in range(C_IN):
                        w = w3_ref[(co * C_IN + ci) * 9 + t]
                        ey[co] = ey[co] + w * sh[ci]

        # Lane-dense stores: last dim hw (= H*W) is a multiple of 128 for the
        # small-image shapes this path targets.
        ex_ref[b] = jnp.concatenate(ex, axis=0).astype(ex_ref.dtype)
        ey_ref[b] = jnp.concatenate(ey, axis=0).astype(ey_ref.dtype)


@jax.jit
def edge_detection_forward(x, w1, b1, w3, b3):
    """x: (N, 3, H, W) float32.  Returns (edge_x, edge_y)."""
    N, C, H, W = x.shape
    assert C == C_IN
    HW = H * W
    NB = _images_per_step(N, HW)
    grid = (N // NB,)

    x3 = x.reshape(N, C_IN, HW)                      # free reshape, no transpose
    masks = jnp.asarray(_make_tap_masks(H, W))       # (9, HW) compile-time constant

    w1_flat = w1.reshape(-1).astype(jnp.float32)     # index: co*C_IN + ci
    b1f = b1.astype(jnp.float32)
    w3_flat = w3.reshape(-1).astype(jnp.float32)     # index: (co*C_IN+ci)*9 + (ky*3+kx)
    b3f = b3.astype(jnp.float32)

    smem = pl.BlockSpec(memory_space=pltpu.MemorySpace.SMEM)

    flops = 2 * N * C_OUT * C_IN * 10 * HW           # 1x1 + 3x3 MACs, x2
    bytes_accessed = 4 * N * (C_IN + 2 * C_OUT) * HW

    kernel = functools.partial(_edge_kernel, W=W)

    ex_int, ey = pl.pallas_call(
        kernel,
        out_shape=(
            jax.ShapeDtypeStruct((N, C_OUT, HW), x.dtype),
            jax.ShapeDtypeStruct((N, C_OUT, HW), x.dtype),
        ),
        grid=grid,
        in_specs=[
            pl.BlockSpec((NB, C_IN, HW), lambda n: (n, 0, 0)),
            pl.BlockSpec((9, HW), lambda n: (0, 0)),
            smem,  # w1_flat
            smem,  # b1
            smem,  # w3_flat
            smem,  # b3
        ],
        out_specs=(
            pl.BlockSpec((NB, C_OUT, HW), lambda n: (n, 0, 0)),
            pl.BlockSpec((NB, C_OUT, HW), lambda n: (n, 0, 0)),
        ),
        compiler_params=pltpu.CompilerParams(
            dimension_semantics=("parallel",),
            vmem_limit_bytes=32 * 1024 * 1024,
        ),
        cost_estimate=pl.CostEstimate(
            flops=flops, transcendentals=0, bytes_accessed=bytes_accessed),
    )(x3, masks, w1_flat, b1f, w3_flat, b3f)

    # Layout plumbing only: free reshapes + the constant-bias border of edge_x
    # (Conv2d(k=1, padding=1) produces exactly the bias on its 1-px border).
    ey = ey.reshape(N, C_OUT, H, W)
    ex_int = ex_int.reshape(N, C_OUT, H, W)
    edge_x = jnp.broadcast_to(
        b1f[None, :, None, None].astype(x.dtype), (N, C_OUT, H + 2, W + 2))
    edge_x = jax.lax.dynamic_update_slice(edge_x, ex_int, (0, 0, 1, 1))
    return edge_x, ey


def reference_forward(x, w1, b1, w3, b3):
    """Pure-JAX reference matching PyTorch Conv2d semantics."""
    dn = ("NCHW", "OIHW", "NCHW")
    ex = jax.lax.conv_general_dilated(
        x, w1, window_strides=(1, 1), padding=((1, 1), (1, 1)),
        dimension_numbers=dn) + b1[None, :, None, None]
    ey = jax.lax.conv_general_dilated(
        x, w3, window_strides=(1, 1), padding=((1, 1), (1, 1)),
        dimension_numbers=dn) + b3[None, :, None, None]
    return ex, ey


if __name__ == "__main__":
    key = jax.random.PRNGKey(0)
    k_x, k_w1, k_b1, k_w3, k_b3 = jax.random.split(key, 5)

    # Small deterministic shapes consistent with the module: N=2, C=3, 16x16.
    N, H, W = 2, 16, 16
    x = jax.random.normal(k_x, (N, C_IN, H, W), dtype=jnp.float32)

    # Deterministic parameter init (shapes from nn.Conv2d in __init__).
    w1 = jax.random.normal(k_w1, (C_OUT, C_IN, 1, 1), dtype=jnp.float32) * 0.5
    b1 = jax.random.normal(k_b1, (C_OUT,), dtype=jnp.float32) * 0.1
    w3 = jax.random.normal(k_w3, (C_OUT, C_IN, 3, 3), dtype=jnp.float32) * 0.2
    b3 = jax.random.normal(k_b3, (C_OUT,), dtype=jnp.float32) * 0.1

    edge_x, edge_y = edge_detection_forward(x, w1, b1, w3, b3)
    edge_x, edge_y = jax.block_until_ready((edge_x, edge_y))

    # Correctness check against a pure-JAX reference.
    ref_x, ref_y = reference_forward(x, w1, b1, w3, b3)
    assert edge_x.shape == (N, C_OUT, H + 2, W + 2)
    assert edge_y.shape == (N, C_OUT, H, W)
    assert jnp.allclose(edge_x, ref_x, atol=1e-5, rtol=1e-5)
    assert jnp.allclose(edge_y, ref_y, atol=1e-5, rtol=1e-5)

    print("KERNEL_OK")
</pallas_src>

<mosaic_0001>
module attributes {stable_mosaic.version = 11 : i64} {
  func.func @_edge_kernel(%arg0: i32, %arg1: memref<1x3x256xf32, #tpu.memory_space<vmem>>, %arg2: memref<9x256xf32, #tpu.memory_space<vmem>>, %arg3: memref<9xf32, #tpu.memory_space<smem>>, %arg4: memref<3xf32, #tpu.memory_space<smem>>, %arg5: memref<81xf32, #tpu.memory_space<smem>>, %arg6: memref<3xf32, #tpu.memory_space<smem>>, %arg7: memref<1x3x256xf32, #tpu.memory_space<vmem>>, %arg8: memref<1x3x256xf32, #tpu.memory_space<vmem>>) attributes {dimension_semantics = [#tpu.dimension_semantics<parallel>], iteration_bounds = array<i64: 2>, scalar_prefetch = 0 : i64, scratch_operands = 0 : i64, tpu.core_type = #tpu.core_type<tc>, window_params = [{transform_indices = @transform_0, window_bounds = array<i64: 1, 3, 256>}, {pipeline_mode = #tpu.pipeline_mode<synchronous>, transform_indices = @transform_1, window_bounds = array<i64: 9, 256>}, {transform_indices = @transform_2, window_bounds = array<i64: 9>}, {transform_indices = @transform_3, window_bounds = array<i64: 3>}, {transform_indices = @transform_4, window_bounds = array<i64: 81>}, {transform_indices = @transform_5, window_bounds = array<i64: 3>}, {transform_indices = @transform_6, window_bounds = array<i64: 1, 3, 256>}, {transform_indices = @transform_7, window_bounds = array<i64: 1, 3, 256>}]} {
    %c0 = arith.constant 0 : index
    %c0_0 = arith.constant 0 : index
    %c0_1 = arith.constant 0 : index
    %0 = vector.load %arg1[%c0, %c0_0, %c0_1] : memref<1x3x256xf32, #tpu.memory_space<vmem>>, vector<1x3x256xf32>
    %1 = vector.shape_cast %0 : vector<1x3x256xf32> to vector<3x256xf32>
    %2 = vector.extract_strided_slice %1 {offsets = [0, 0], sizes = [1, 256], strides = [1, 1]} : vector<3x256xf32> to vector<1x256xf32>
    %3 = vector.extract_strided_slice %1 {offsets = [1, 0], sizes = [1, 256], strides = [1, 1]} : vector<3x256xf32> to vector<1x256xf32>
    %4 = vector.extract_strided_slice %1 {offsets = [2, 0], sizes = [1, 256], strides = [1, 1]} : vector<3x256xf32> to vector<1x256xf32>
    %c0_2 = arith.constant 0 : index
    %5 = memref.load %arg4[%c0_2] : memref<3xf32, #tpu.memory_space<smem>>
    %6 = vector.broadcast %5 : f32 to vector<1x256xf32>
    %c1 = arith.constant 1 : index
    %7 = memref.load %arg4[%c1] : memref<3xf32, #tpu.memory_space<smem>>
    %8 = vector.broadcast %7 : f32 to vector<1x256xf32>
    %c2 = arith.constant 2 : index
    %9 = memref.load %arg4[%c2] : memref<3xf32, #tpu.memory_space<smem>>
    %10 = vector.broadcast %9 : f32 to vector<1x256xf32>
    %c0_3 = arith.constant 0 : index
    %11 = memref.load %arg6[%c0_3] : memref<3xf32, #tpu.memory_space<smem>>
    %12 = vector.broadcast %11 : f32 to vector<1x256xf32>
    %c1_4 = arith.constant 1 : index
    %13 = memref.load %arg6[%c1_4] : memref<3xf32, #tpu.memory_space<smem>>
    %14 = vector.broadcast %13 : f32 to vector<1x256xf32>
    %c2_5 = arith.constant 2 : index
    %15 = memref.load %arg6[%c2_5] : memref<3xf32, #tpu.memory_space<smem>>
    %16 = vector.broadcast %15 : f32 to vector<1x256xf32>
    %c0_6 = arith.constant 0 : index
    %17 = memref.load %arg3[%c0_6] : memref<9xf32, #tpu.memory_space<smem>>
    %18 = vector.broadcast %17 : f32 to vector<1x256xf32>
    %19 = arith.mulf %18, %2 : vector<1x256xf32>
    %20 = arith.addf %6, %19 : vector<1x256xf32>
    %c1_7 = arith.constant 1 : index
    %21 = memref.load %arg3[%c1_7] : memref<9xf32, #tpu.memory_space<smem>>
    %22 = vector.broadcast %21 : f32 to vector<1x256xf32>
    %23 = arith.mulf %22, %3 : vector<1x256xf32>
    %24 = arith.addf %20, %23 : vector<1x256xf32>
    %c2_8 = arith.constant 2 : index
    %25 = memref.load %arg3[%c2_8] : memref<9xf32, #tpu.memory_space<smem>>
    %26 = vector.broadcast %25 : f32 to vector<1x256xf32>
    %27 = arith.mulf %26, %4 : vector<1x256xf32>
    %28 = arith.addf %24, %27 : vector<1x256xf32>
    %c3 = arith.constant 3 : index
    %29 = memref.load %arg3[%c3] : memref<9xf32, #tpu.memory_space<smem>>
    %30 = vector.broadcast %29 : f32 to vector<1x256xf32>
    %31 = arith.mulf %30, %2 : vector<1x256xf32>
    %32 = arith.addf %8, %31 : vector<1x256xf32>
    %c4 = arith.constant 4 : index
    %33 = memref.load %arg3[%c4] : memref<9xf32, #tpu.memory_space<smem>>
    %34 = vector.broadcast %33 : f32 to vector<1x256xf32>
    %35 = arith.mulf %34, %3 : vector<1x256xf32>
    %36 = arith.addf %32, %35 : vector<1x256xf32>
    %c5 = arith.constant 5 : index
    %37 = memref.load %arg3[%c5] : memref<9xf32, #tpu.memory_space<smem>>
    %38 = vector.broadcast %37 : f32 to vector<1x256xf32>
    %39 = arith.mulf %38, %4 : vector<1x256xf32>
    %40 = arith.addf %36, %39 : vector<1x256xf32>
    %c6 = arith.constant 6 : index
    %41 = memref.load %arg3[%c6] : memref<9xf32, #tpu.memory_space<smem>>
    %42 = vector.broadcast %41 : f32 to vector<1x256xf32>
    %43 = arith.mulf %42, %2 : vector<1x256xf32>
    %44 = arith.addf %10, %43 : vector<1x256xf32>
    %c7 = arith.constant 7 : index
    %45 = memref.load %arg3[%c7] : memref<9xf32, #tpu.memory_space<smem>>
    %46 = vector.broadcast %45 : f32 to vector<1x256xf32>
    %47 = arith.mulf %46, %3 : vector<1x256xf32>
    %48 = arith.addf %44, %47 : vector<1x256xf32>
    %c8 = arith.constant 8 : index
    %49 = memref.load %arg3[%c8] : memref<9xf32, #tpu.memory_space<smem>>
    %50 = vector.broadcast %49 : f32 to vector<1x256xf32>
    %51 = arith.mulf %50, %4 : vector<1x256xf32>
    %52 = arith.addf %48, %51 : vector<1x256xf32>
    %c17_i32 = arith.constant 17 : i32
    %53 = tpu.dynamic_rotate %1 by %c17_i32 dim 1 : vector<3x256xf32>, i32 -> vector<3x256xf32>
    %c0_9 = arith.constant 0 : index
    %c0_10 = arith.constant 0 : index
    %54 = vector.load %arg2[%c0_9, %c0_10] : memref<9x256xf32, #tpu.memory_space<vmem>>, vector<1x256xf32>
    %55 = vector.broadcast %54 : vector<1x256xf32> to vector<3x256xf32>
    %56 = arith.mulf %53, %55 : vector<3x256xf32>
    %57 = vector.extract_strided_slice %56 {offsets = [0, 0], sizes = [1, 256], strides = [1, 1]} : vector<3x256xf32> to vector<1x256xf32>
    %58 = vector.extract_strided_slice %56 {offsets = [1, 0], sizes = [1, 256], strides = [1, 1]} : vector<3x256xf32> to vector<1x256xf32>
    %59 = vector.extract_strided_slice %56 {offsets = [2, 0], sizes = [1, 256], strides = [1, 1]} : vector<3x256xf32> to vector<1x256xf32>
    %c0_11 = arith.constant 0 : index
    %60 = memref.load %arg5[%c0_11] : memref<81xf32, #tpu.memory_space<smem>>
    %61 = vector.broadcast %60 : f32 to vector<1x256xf32>
    %62 = arith.mulf %61, %57 : vector<1x256xf32>
    %63 = arith.addf %12, %62 : vector<1x256xf32>
    %c9 = arith.constant 9 : index
    %64 = memref.load %arg5[%c9] : memref<81xf32, #tpu.memory_space<smem>>
    %65 = vector.broadcast %64 : f32 to vector<1x256xf32>
    %66 = arith.mulf %65, %58 : vector<1x256xf32>
    %67 = arith.addf %63, %66 : vector<1x256xf32>
    %c18 = arith.constant 18 : index
    %68 = memref.load %arg5[%c18] : memref<81xf32, #tpu.memory_space<smem>>
    %69 = vector.broadcast %68 : f32 to vector<1x256xf32>
    %70 = arith.mulf %69, %59 : vector<1x256xf32>
    %71 = arith.addf %67, %70 : vector<1x256xf32>
    %c27 = arith.constant 27 : index
    %72 = memref.load %arg5[%c27] : memref<81xf32, #tpu.memory_space<smem>>
    %73 = vector.broadcast %72 : f32 to vector<1x256xf32>
    %74 = arith.mulf %73, %57 : vector<1x256xf32>
    %75 = arith.addf %14, %74 : vector<1x256xf32>
    %c36 = arith.constant 36 : index
    %76 = memref.load %arg5[%c36] : memref<81xf32, #tpu.memory_space<smem>>
    %77 = vector.broadcast %76 : f32 to vector<1x256xf32>
    %78 = arith.mulf %77, %58 : vector<1x256xf32>
    %79 = arith.addf %75, %78 : vector<1x256xf32>
    %c45 = arith.constant 45 : index
    %80 = memref.load %arg5[%c45] : memref<81xf32, #tpu.memory_space<smem>>
    %81 = vector.broadcast %80 : f32 to vector<1x256xf32>
    %82 = arith.mulf %81, %59 : vector<1x256xf32>
    %83 = arith.addf %79, %82 : vector<1x256xf32>
    %c54 = arith.constant 54 : index
    %84 = memref.load %arg5[%c54] : memref<81xf32, #tpu.memory_space<smem>>
    %85 = vector.broadcast %84 : f32 to vector<1x256xf32>
    %86 = arith.mulf %85, %57 : vector<1x256xf32>
    %87 = arith.addf %16, %86 : vector<1x256xf32>
    %c63 = arith.constant 63 : index
    %88 = memref.load %arg5[%c63] : memref<81xf32, #tpu.memory_space<smem>>
    %89 = vector.broadcast %88 : f32 to vector<1x256xf32>
    %90 = arith.mulf %89, %58 : vector<1x256xf32>
    %91 = arith.addf %87, %90 : vector<1x256xf32>
    %c72 = arith.constant 72 : index
    %92 = memref.load %arg5[%c72] : memref<81xf32, #tpu.memory_space<smem>>
    %93 = vector.broadcast %92 : f32 to vector<1x256xf32>
    %94 = arith.mulf %93, %59 : vector<1x256xf32>
    %95 = arith.addf %91, %94 : vector<1x256xf32>
    %c16_i32 = arith.constant 16 : i32
    %96 = tpu.dynamic_rotate %1 by %c16_i32 dim 1 : vector<3x256xf32>, i32 -> vector<3x256xf32>
    %c1_12 = arith.constant 1 : index
    %c0_13 = arith.constant 0 : index
    %97 = vector.load %arg2[%c1_12, %c0_13] : memref<9x256xf32, #tpu.memory_space<vmem>>, vector<1x256xf32>
    %98 = vector.broadcast %97 : vector<1x256xf32> to vector<3x256xf32>
    %99 = arith.mulf %96, %98 : vector<3x256xf32>
    %100 = vector.extract_strided_slice %99 {offsets = [0, 0], sizes = [1, 256], strides = [1, 1]} : vector<3x256xf32> to vector<1x256xf32>
    %101 = vector.extract_strided_slice %99 {offsets = [1, 0], sizes = [1, 256], strides = [1, 1]} : vector<3x256xf32> to vector<1x256xf32>
    %102 = vector.extract_strided_slice %99 {offsets = [2, 0], sizes = [1, 256], strides = [1, 1]} : vector<3x256xf32> to vector<1x256xf32>
    %c1_14 = arith.constant 1 : index
    %103 = memref.load %arg5[%c1_14] : memref<81xf32, #tpu.memory_space<smem>>
    %104 = vector.broadcast %103 : f32 to vector<1x256xf32>
    %105 = arith.mulf %104, %100 : vector<1x256xf32>
    %106 = arith.addf %71, %105 : vector<1x256xf32>
    %c10 = arith.constant 10 : index
    %107 = memref.load %arg5[%c10] : memref<81xf32, #tpu.memory_space<smem>>
    %108 = vector.broadcast %107 : f32 to vector<1x256xf32>
    %109 = arith.mulf %108, %101 : vector<1x256xf32>
    %110 = arith.addf %106, %109 : vector<1x256xf32>
    %c19 = arith.constant 19 : index
    %111 = memref.load %arg5[%c19] : memref<81xf32, #tpu.memory_space<smem>>
    %112 = vector.broadcast %111 : f32 to vector<1x256xf32>
    %113 = arith.mulf %112, %102 : vector<1x256xf32>
    %114 = arith.addf %110, %113 : vector<1x256xf32>
    %c28 = arith.constant 28 : index
    %115 = memref.load %arg5[%c28] : memref<81xf32, #tpu.memory_space<smem>>
    %116 = vector.broadcast %115 : f32 to vector<1x256xf32>
    %117 = arith.mulf %116, %100 : vector<1x256xf32>
    %118 = arith.addf %83, %117 : vector<1x256xf32>
    %c37 = arith.constant 37 : index
    %119 = memref.load %arg5[%c37] : memref<81xf32, #tpu.memory_space<smem>>
    %120 = vector.broadcast %119 : f32 to vector<1x256xf32>
    %121 = arith.mulf %120, %101 : vector<1x256xf32>
    %122 = arith.addf %118, %121 : vector<1x256xf32>
    %c46 = arith.constant 46 : index
    %123 = memref.load %arg5[%c46] : memref<81xf32, #tpu.memory_space<smem>>
    %124 = vector.broadcast %123 : f32 to vector<1x256xf32>
    %125 = arith.mulf %124, %102 : vector<1x256xf32>
    %126 = arith.addf %122, %125 : vector<1x256xf32>
    %c55 = arith.constant 55 : index
    %127 = memref.load %arg5[%c55] : memref<81xf32, #tpu.memory_space<smem>>
    %128 = vector.broadcast %127 : f32 to vector<1x256xf32>
    %129 = arith.mulf %128, %100 : vector<1x256xf32>
    %130 = arith.addf %95, %129 : vector<1x256xf32>
    %c64 = arith.constant 64 : index
    %131 = memref.load %arg5[%c64] : memref<81xf32, #tpu.memory_space<smem>>
    %132 = vector.broadcast %131 : f32 to vector<1x256xf32>
    %133 = arith.mulf %132, %101 : vector<1x256xf32>
    %134 = arith.addf %130, %133 : vector<1x256xf32>
    %c73 = arith.constant 73 : index
    %135 = memref.load %arg5[%c73] : memref<81xf32, #tpu.memory_space<smem>>
    %136 = vector.broadcast %135 : f32 to vector<1x256xf32>
    %137 = arith.mulf %136, %102 : vector<1x256xf32>
    %138 = arith.addf %134, %137 : vector<1x256xf32>
    %c15_i32 = arith.constant 15 : i32
    %139 = tpu.dynamic_rotate %1 by %c15_i32 dim 1 : vector<3x256xf32>, i32 -> vector<3x256xf32>
    %c2_15 = arith.constant 2 : index
    %c0_16 = arith.constant 0 : index
    %140 = vector.load %arg2[%c2_15, %c0_16] : memref<9x256xf32, #tpu.memory_space<vmem>>, vector<1x256xf32>
    %141 = vector.broadcast %140 : vector<1x256xf32> to vector<3x256xf32>
    %142 = arith.mulf %139, %141 : vector<3x256xf32>
    %143 = vector.extract_strided_slice %142 {offsets = [0, 0], sizes = [1, 256], strides = [1, 1]} : vector<3x256xf32> to vector<1x256xf32>
    %144 = vector.extract_strided_slice %142 {offsets = [1, 0], sizes = [1, 256], strides = [1, 1]} : vector<3x256xf32> to vector<1x256xf32>
    %145 = vector.extract_strided_slice %142 {offsets = [2, 0], sizes = [1, 256], strides = [1, 1]} : vector<3x256xf32> to vector<1x256xf32>
    %c2_17 = arith.constant 2 : index
    %146 = memref.load %arg5[%c2_17] : memref<81xf32, #tpu.memory_space<smem>>
    %147 = vector.broadcast %146 : f32 to vector<1x256xf32>
    %148 = arith.mulf %147, %143 : vector<1x256xf32>
    %149 = arith.addf %114, %148 : vector<1x256xf32>
    %c11 = arith.constant 11 : index
    %150 = memref.load %arg5[%c11] : memref<81xf32, #tpu.memory_space<smem>>
    %151 = vector.broadcast %150 : f32 to vector<1x256xf32>
    %152 = arith.mulf %151, %144 : vector<1x256xf32>
    %153 = arith.addf %149, %152 : vector<1x256xf32>
    %c20 = arith.constant 20 : index
    %154 = memref.load %arg5[%c20] : memref<81xf32, #tpu.memory_space<smem>>
    %155 = vector.broadcast %154 : f32 to vector<1x256xf32>
    %156 = arith.mulf %155, %145 : vector<1x256xf32>
    %157 = arith.addf %153, %156 : vector<1x256xf32>
    %c29 = arith.constant 29 : index
    %158 = memref.load %arg5[%c29] : memref<81xf32, #tpu.memory_space<smem>>
    %159 = vector.broadcast %158 : f32 to vector<1x256xf32>
    %160 = arith.mulf %159, %143 : vector<1x256xf32>
    %161 = arith.addf %126, %160 : vector<1x256xf32>
    %c38 = arith.constant 38 : index
    %162 = memref.load %arg5[%c38] : memref<81xf32, #tpu.memory_space<smem>>
    %163 = vector.broadcast %162 : f32 to vector<1x256xf32>
    %164 = arith.mulf %163, %144 : vector<1x256xf32>
    %165 = arith.addf %161, %164 : vector<1x256xf32>
    %c47 = arith.constant 47 : index
    %166 = memref.load %arg5[%c47] : memref<81xf32, #tpu.memory_space<smem>>
    %167 = vector.broadcast %166 : f32 to vector<1x256xf32>
    %168 = arith.mulf %167, %145 : vector<1x256xf32>
    %169 = arith.addf %165, %168 : vector<1x256xf32>
    %c56 = arith.constant 56 : index
    %170 = memref.load %arg5[%c56] : memref<81xf32, #tpu.memory_space<smem>>
    %171 = vector.broadcast %170 : f32 to vector<1x256xf32>
    %172 = arith.mulf %171, %143 : vector<1x256xf32>
    %173 = arith.addf %138, %172 : vector<1x256xf32>
    %c65 = arith.constant 65 : index
    %174 = memref.load %arg5[%c65] : memref<81xf32, #tpu.memory_space<smem>>
    %175 = vector.broadcast %174 : f32 to vector<1x256xf32>
    %176 = arith.mulf %175, %144 : vector<1x256xf32>
    %177 = arith.addf %173, %176 : vector<1x256xf32>
    %c74 = arith.constant 74 : index
    %178 = memref.load %arg5[%c74] : memref<81xf32, #tpu.memory_space<smem>>
    %179 = vector.broadcast %178 : f32 to vector<1x256xf32>
    %180 = arith.mulf %179, %145 : vector<1x256xf32>
    %181 = arith.addf %177, %180 : vector<1x256xf32>
    %c1_i32 = arith.constant 1 : i32
    %182 = tpu.dynamic_rotate %1 by %c1_i32 dim 1 : vector<3x256xf32>, i32 -> vector<3x256xf32>
    %c3_18 = arith.constant 3 : index
    %c0_19 = arith.constant 0 : index
    %183 = vector.load %arg2[%c3_18, %c0_19] : memref<9x256xf32, #tpu.memory_space<vmem>>, vector<1x256xf32>
    %184 = vector.broadcast %183 : vector<1x256xf32> to vector<3x256xf32>
    %185 = arith.mulf %182, %184 : vector<3x256xf32>
    %186 = vector.extract_strided_slice %185 {offsets = [0, 0], sizes = [1, 256], strides = [1, 1]} : vector<3x256xf32> to vector<1x256xf32>
    %187 = vector.extract_strided_slice %185 {offsets = [1, 0], sizes = [1, 256], strides = [1, 1]} : vector<3x256xf32> to vector<1x256xf32>
    %188 = vector.extract_strided_slice %185 {offsets = [2, 0], sizes = [1, 256], strides = [1, 1]} : vector<3x256xf32> to vector<1x256xf32>
    %c3_20 = arith.constant 3 : index
    %189 = memref.load %arg5[%c3_20] : memref<81xf32, #tpu.memory_space<smem>>
    %190 = vector.broadcast %189 : f32 to vector<1x256xf32>
    %191 = arith.mulf %190, %186 : vector<1x256xf32>
    %192 = arith.addf %157, %191 : vector<1x256xf32>
    %c12 = arith.constant 12 : index
    %193 = memref.load %arg5[%c12] : memref<81xf32, #tpu.memory_space<smem>>
    %194 = vector.broadcast %193 : f32 to vector<1x256xf32>
    %195 = arith.mulf %194, %187 : vector<1x256xf32>
    %196 = arith.addf %192, %195 : vector<1x256xf32>
    %c21 = arith.constant 21 : index
    %197 = memref.load %arg5[%c21] : memref<81xf32, #tpu.memory_space<smem>>
    %198 = vector.broadcast %197 : f32 to vector<1x256xf32>
    %199 = arith.mulf %198, %188 : vector<1x256xf32>
    %200 = arith.addf %196, %199 : vector<1x256xf32>
    %c30 = arith.constant 30 : index
    %201 = memref.load %arg5[%c30] : memref<81xf32, #tpu.memory_space<smem>>
    %202 = vector.broadcast %201 : f32 to vector<1x256xf32>
    %203 = arith.mulf %202, %186 : vector<1x256xf32>
    %204 = arith.addf %169, %203 : vector<1x256xf32>
    %c39 = arith.constant 39 : index
    %205 = memref.load %arg5[%c39] : memref<81xf32, #tpu.memory_space<smem>>
    %206 = vector.broadcast %205 : f32 to vector<1x256xf32>
    %207 = arith.mulf %206, %187 : vector<1x256xf32>
    %208 = arith.addf %204, %207 : vector<1x256xf32>
    %c48 = arith.constant 48 : index
    %209 = memref.load %arg5[%c48] : memref<81xf32, #tpu.memory_space<smem>>
    %210 = vector.broadcast %209 : f32 to vector<1x256xf32>
    %211 = arith.mulf %210, %188 : vector<1x256xf32>
    %212 = arith.addf %208, %211 : vector<1x256xf32>
    %c57 = arith.constant 57 : index
    %213 = memref.load %arg5[%c57] : memref<81xf32, #tpu.memory_space<smem>>
    %214 = vector.broadcast %213 : f32 to vector<1x256xf32>
    %215 = arith.mulf %214, %186 : vector<1x256xf32>
    %216 = arith.addf %181, %215 : vector<1x256xf32>
    %c66 = arith.constant 66 : index
    %217 = memref.load %arg5[%c66] : memref<81xf32, #tpu.memory_space<smem>>
    %218 = vector.broadcast %217 : f32 to vector<1x256xf32>
    %219 = arith.mulf %218, %187 : vector<1x256xf32>
    %220 = arith.addf %216, %219 : vector<1x256xf32>
    %c75 = arith.constant 75 : index
    %221 = memref.load %arg5[%c75] : memref<81xf32, #tpu.memory_space<smem>>
    %222 = vector.broadcast %221 : f32 to vector<1x256xf32>
    %223 = arith.mulf %222, %188 : vector<1x256xf32>
    %224 = arith.addf %220, %223 : vector<1x256xf32>
    %c4_21 = arith.constant 4 : index
    %225 = memref.load %arg5[%c4_21] : memref<81xf32, #tpu.memory_space<smem>>
    %226 = vector.broadcast %225 : f32 to vector<1x256xf32>
    %227 = arith.mulf %226, %2 : vector<1x256xf32>
    %228 = arith.addf %200, %227 : vector<1x256xf32>
    %c13 = arith.constant 13 : index
    %229 = memref.load %arg5[%c13] : memref<81xf32, #tpu.memory_space<smem>>
    %230 = vector.broadcast %229 : f32 to vector<1x256xf32>
    %231 = arith.mulf %230, %3 : vector<1x256xf32>
    %232 = arith.addf %228, %231 : vector<1x256xf32>
    %c22 = arith.constant 22 : index
    %233 = memref.load %arg5[%c22] : memref<81xf32, #tpu.memory_space<smem>>
    %234 = vector.broadcast %233 : f32 to vector<1x256xf32>
    %235 = arith.mulf %234, %4 : vector<1x256xf32>
    %236 = arith.addf %232, %235 : vector<1x256xf32>
    %c31 = arith.constant 31 : index
    %237 = memref.load %arg5[%c31] : memref<81xf32, #tpu.memory_space<smem>>
    %238 = vector.broadcast %237 : f32 to vector<1x256xf32>
    %239 = arith.mulf %238, %2 : vector<1x256xf32>
    %240 = arith.addf %212, %239 : vector<1x256xf32>
    %c40 = arith.constant 40 : index
    %241 = memref.load %arg5[%c40] : memref<81xf32, #tpu.memory_space<smem>>
    %242 = vector.broadcast %241 : f32 to vector<1x256xf32>
    %243 = arith.mulf %242, %3 : vector<1x256xf32>
    %244 = arith.addf %240, %243 : vector<1x256xf32>
    %c49 = arith.constant 49 : index
    %245 = memref.load %arg5[%c49] : memref<81xf32, #tpu.memory_space<smem>>
    %246 = vector.broadcast %245 : f32 to vector<1x256xf32>
    %247 = arith.mulf %246, %4 : vector<1x256xf32>
    %248 = arith.addf %244, %247 : vector<1x256xf32>
    %c58 = arith.constant 58 : index
    %249 = memref.load %arg5[%c58] : memref<81xf32, #tpu.memory_space<smem>>
    %250 = vector.broadcast %249 : f32 to vector<1x256xf32>
    %251 = arith.mulf %250, %2 : vector<1x256xf32>
    %252 = arith.addf %224, %251 : vector<1x256xf32>
    %c67 = arith.constant 67 : index
    %253 = memref.load %arg5[%c67] : memref<81xf32, #tpu.memory_space<smem>>
    %254 = vector.broadcast %253 : f32 to vector<1x256xf32>
    %255 = arith.mulf %254, %3 : vector<1x256xf32>
    %256 = arith.addf %252, %255 : vector<1x256xf32>
    %c76 = arith.constant 76 : index
    %257 = memref.load %arg5[%c76] : memref<81xf32, #tpu.memory_space<smem>>
    %258 = vector.broadcast %257 : f32 to vector<1x256xf32>
    %259 = arith.mulf %258, %4 : vector<1x256xf32>
    %260 = arith.addf %256, %259 : vector<1x256xf32>
    %c255_i32 = arith.constant 255 : i32
    %261 = tpu.dynamic_rotate %1 by %c255_i32 dim 1 : vector<3x256xf32>, i32 -> vector<3x256xf32>
    %c5_22 = arith.constant 5 : index
    %c0_23 = arith.constant 0 : index
    %262 = vector.load %arg2[%c5_22, %c0_23] : memref<9x256xf32, #tpu.memory_space<vmem>>, vector<1x256xf32>
    %263 = vector.broadcast %262 : vector<1x256xf32> to vector<3x256xf32>
    %264 = arith.mulf %261, %263 : vector<3x256xf32>
    %265 = vector.extract_strided_slice %264 {offsets = [0, 0], sizes = [1, 256], strides = [1, 1]} : vector<3x256xf32> to vector<1x256xf32>
    %266 = vector.extract_strided_slice %264 {offsets = [1, 0], sizes = [1, 256], strides = [1, 1]} : vector<3x256xf32> to vector<1x256xf32>
    %267 = vector.extract_strided_slice %264 {offsets = [2, 0], sizes = [1, 256], strides = [1, 1]} : vector<3x256xf32> to vector<1x256xf32>
    %c5_24 = arith.constant 5 : index
    %268 = memref.load %arg5[%c5_24] : memref<81xf32, #tpu.memory_space<smem>>
    %269 = vector.broadcast %268 : f32 to vector<1x256xf32>
    %270 = arith.mulf %269, %265 : vector<1x256xf32>
    %271 = arith.addf %236, %270 : vector<1x256xf32>
    %c14 = arith.constant 14 : index
    %272 = memref.load %arg5[%c14] : memref<81xf32, #tpu.memory_space<smem>>
    %273 = vector.broadcast %272 : f32 to vector<1x256xf32>
    %274 = arith.mulf %273, %266 : vector<1x256xf32>
    %275 = arith.addf %271, %274 : vector<1x256xf32>
    %c23 = arith.constant 23 : index
    %276 = memref.load %arg5[%c23] : memref<81xf32, #tpu.memory_space<smem>>
    %277 = vector.broadcast %276 : f32 to vector<1x256xf32>
    %278 = arith.mulf %277, %267 : vector<1x256xf32>
    %279 = arith.addf %275, %278 : vector<1x256xf32>
    %c32 = arith.constant 32 : index
    %280 = memref.load %arg5[%c32] : memref<81xf32, #tpu.memory_space<smem>>
    %281 = vector.broadcast %280 : f32 to vector<1x256xf32>
    %282 = arith.mulf %281, %265 : vector<1x256xf32>
    %283 = arith.addf %248, %282 : vector<1x256xf32>
    %c41 = arith.constant 41 : index
    %284 = memref.load %arg5[%c41] : memref<81xf32, #tpu.memory_space<smem>>
    %285 = vector.broadcast %284 : f32 to vector<1x256xf32>
    %286 = arith.mulf %285, %266 : vector<1x256xf32>
    %287 = arith.addf %283, %286 : vector<1x256xf32>
    %c50 = arith.constant 50 : index
    %288 = memref.load %arg5[%c50] : memref<81xf32, #tpu.memory_space<smem>>
    %289 = vector.broadcast %288 : f32 to vector<1x256xf32>
    %290 = arith.mulf %289, %267 : vector<1x256xf32>
    %291 = arith.addf %287, %290 : vector<1x256xf32>
    %c59 = arith.constant 59 : index
    %292 = memref.load %arg5[%c59] : memref<81xf32, #tpu.memory_space<smem>>
    %293 = vector.broadcast %292 : f32 to vector<1x256xf32>
    %294 = arith.mulf %293, %265 : vector<1x256xf32>
    %295 = arith.addf %260, %294 : vector<1x256xf32>
    %c68 = arith.constant 68 : index
    %296 = memref.load %arg5[%c68] : memref<81xf32, #tpu.memory_space<smem>>
    %297 = vector.broadcast %296 : f32 to vector<1x256xf32>
    %298 = arith.mulf %297, %266 : vector<1x256xf32>
    %299 = arith.addf %295, %298 : vector<1x256xf32>
    %c77 = arith.constant 77 : index
    %300 = memref.load %arg5[%c77] : memref<81xf32, #tpu.memory_space<smem>>
    %301 = vector.broadcast %300 : f32 to vector<1x256xf32>
    %302 = arith.mulf %301, %267 : vector<1x256xf32>
    %303 = arith.addf %299, %302 : vector<1x256xf32>
    %c241_i32 = arith.constant 241 : i32
    %304 = tpu.dynamic_rotate %1 by %c241_i32 dim 1 : vector<3x256xf32>, i32 -> vector<3x256xf32>
    %c6_25 = arith.constant 6 : index
    %c0_26 = arith.constant 0 : index
    %305 = vector.load %arg2[%c6_25, %c0_26] : memref<9x256xf32, #tpu.memory_space<vmem>>, vector<1x256xf32>
    %306 = vector.broadcast %305 : vector<1x256xf32> to vector<3x256xf32>
    %307 = arith.mulf %304, %306 : vector<3x256xf32>
    %308 = vector.extract_strided_slice %307 {offsets = [0, 0], sizes = [1, 256], strides = [1, 1]} : vector<3x256xf32> to vector<1x256xf32>
    %309 = vector.extract_strided_slice %307 {offsets = [1, 0], sizes = [1, 256], strides = [1, 1]} : vector<3x256xf32> to vector<1x256xf32>
    %310 = vector.extract_strided_slice %307 {offsets = [2, 0], sizes = [1, 256], strides = [1, 1]} : vector<3x256xf32> to vector<1x256xf32>
    %c6_27 = arith.constant 6 : index
    %311 = memref.load %arg5[%c6_27] : memref<81xf32, #tpu.memory_space<smem>>
    %312 = vector.broadcast %311 : f32 to vector<1x256xf32>
    %313 = arith.mulf %312, %308 : vector<1x256xf32>
    %314 = arith.addf %279, %313 : vector<1x256xf32>
    %c15 = arith.constant 15 : index
    %315 = memref.load %arg5[%c15] : memref<81xf32, #tpu.memory_space<smem>>
    %316 = vector.broadcast %315 : f32 to vector<1x256xf32>
    %317 = arith.mulf %316, %309 : vector<1x256xf32>
    %318 = arith.addf %314, %317 : vector<1x256xf32>
    %c24 = arith.constant 24 : index
    %319 = memref.load %arg5[%c24] : memref<81xf32, #tpu.memory_space<smem>>
    %320 = vector.broadcast %319 : f32 to vector<1x256xf32>
    %321 = arith.mulf %320, %310 : vector<1x256xf32>
    %322 = arith.addf %318, %321 : vector<1x256xf32>
    %c33 = arith.constant 33 : index
    %323 = memref.load %arg5[%c33] : memref<81xf32, #tpu.memory_space<smem>>
    %324 = vector.broadcast %323 : f32 to vector<1x256xf32>
    %325 = arith.mulf %324, %308 : vector<1x256xf32>
    %326 = arith.addf %291, %325 : vector<1x256xf32>
    %c42 = arith.constant 42 : index
    %327 = memref.load %arg5[%c42] : memref<81xf32, #tpu.memory_space<smem>>
    %328 = vector.broadcast %327 : f32 to vector<1x256xf32>
    %329 = arith.mulf %328, %309 : vector<1x256xf32>
    %330 = arith.addf %326, %329 : vector<1x256xf32>
    %c51 = arith.constant 51 : index
    %331 = memref.load %arg5[%c51] : memref<81xf32, #tpu.memory_space<smem>>
    %332 = vector.broadcast %331 : f32 to vector<1x256xf32>
    %333 = arith.mulf %332, %310 : vector<1x256xf32>
    %334 = arith.addf %330, %333 : vector<1x256xf32>
    %c60 = arith.constant 60 : index
    %335 = memref.load %arg5[%c60] : memref<81xf32, #tpu.memory_space<smem>>
    %336 = vector.broadcast %335 : f32 to vector<1x256xf32>
    %337 = arith.mulf %336, %308 : vector<1x256xf32>
    %338 = arith.addf %303, %337 : vector<1x256xf32>
    %c69 = arith.constant 69 : index
    %339 = memref.load %arg5[%c69] : memref<81xf32, #tpu.memory_space<smem>>
    %340 = vector.broadcast %339 : f32 to vector<1x256xf32>
    %341 = arith.mulf %340, %309 : vector<1x256xf32>
    %342 = arith.addf %338, %341 : vector<1x256xf32>
    %c78 = arith.constant 78 : index
    %343 = memref.load %arg5[%c78] : memref<81xf32, #tpu.memory_space<smem>>
    %344 = vector.broadcast %343 : f32 to vector<1x256xf32>
    %345 = arith.mulf %344, %310 : vector<1x256xf32>
    %346 = arith.addf %342, %345 : vector<1x256xf32>
    %c240_i32 = arith.constant 240 : i32
    %347 = tpu.dynamic_rotate %1 by %c240_i32 dim 1 : vector<3x256xf32>, i32 -> vector<3x256xf32>
    %c7_28 = arith.constant 7 : index
    %c0_29 = arith.constant 0 : index
    %348 = vector.load %arg2[%c7_28, %c0_29] : memref<9x256xf32, #tpu.memory_space<vmem>>, vector<1x256xf32>
    %349 = vector.broadcast %348 : vector<1x256xf32> to vector<3x256xf32>
    %350 = arith.mulf %347, %349 : vector<3x256xf32>
    %351 = vector.extract_strided_slice %350 {offsets = [0, 0], sizes = [1, 256], strides = [1, 1]} : vector<3x256xf32> to vector<1x256xf32>
    %352 = vector.extract_strided_slice %350 {offsets = [1, 0], sizes = [1, 256], strides = [1, 1]} : vector<3x256xf32> to vector<1x256xf32>
    %353 = vector.extract_strided_slice %350 {offsets = [2, 0], sizes = [1, 256], strides = [1, 1]} : vector<3x256xf32> to vector<1x256xf32>
    %c7_30 = arith.constant 7 : index
    %354 = memref.load %arg5[%c7_30] : memref<81xf32, #tpu.memory_space<smem>>
    %355 = vector.broadcast %354 : f32 to vector<1x256xf32>
    %356 = arith.mulf %355, %351 : vector<1x256xf32>
    %357 = arith.addf %322, %356 : vector<1x256xf32>
    %c16 = arith.constant 16 : index
    %358 = memref.load %arg5[%c16] : memref<81xf32, #tpu.memory_space<smem>>
    %359 = vector.broadcast %358 : f32 to vector<1x256xf32>
    %360 = arith.mulf %359, %352 : vector<1x256xf32>
    %361 = arith.addf %357, %360 : vector<1x256xf32>
    %c25 = arith.constant 25 : index
    %362 = memref.load %arg5[%c25] : memref<81xf32, #tpu.memory_space<smem>>
    %363 = vector.broadcast %362 : f32 to vector<1x256xf32>
    %364 = arith.mulf %363, %353 : vector<1x256xf32>
    %365 = arith.addf %361, %364 : vector<1x256xf32>
    %c34 = arith.constant 34 : index
    %366 = memref.load %arg5[%c34] : memref<81xf32, #tpu.memory_space<smem>>
    %367 = vector.broadcast %366 : f32 to vector<1x256xf32>
    %368 = arith.mulf %367, %351 : vector<1x256xf32>
    %369 = arith.addf %334, %368 : vector<1x256xf32>
    %c43 = arith.constant 43 : index
    %370 = memref.load %arg5[%c43] : memref<81xf32, #tpu.memory_space<smem>>
    %371 = vector.broadcast %370 : f32 to vector<1x256xf32>
    %372 = arith.mulf %371, %352 : vector<1x256xf32>
    %373 = arith.addf %369, %372 : vector<1x256xf32>
    %c52 = arith.constant 52 : index
    %374 = memref.load %arg5[%c52] : memref<81xf32, #tpu.memory_space<smem>>
    %375 = vector.broadcast %374 : f32 to vector<1x256xf32>
    %376 = arith.mulf %375, %353 : vector<1x256xf32>
    %377 = arith.addf %373, %376 : vector<1x256xf32>
    %c61 = arith.constant 61 : index
    %378 = memref.load %arg5[%c61] : memref<81xf32, #tpu.memory_space<smem>>
    %379 = vector.broadcast %378 : f32 to vector<1x256xf32>
    %380 = arith.mulf %379, %351 : vector<1x256xf32>
    %381 = arith.addf %346, %380 : vector<1x256xf32>
    %c70 = arith.constant 70 : index
    %382 = memref.load %arg5[%c70] : memref<81xf32, #tpu.memory_space<smem>>
    %383 = vector.broadcast %382 : f32 to vector<1x256xf32>
    %384 = arith.mulf %383, %352 : vector<1x256xf32>
    %385 = arith.addf %381, %384 : vector<1x256xf32>
    %c79 = arith.constant 79 : index
    %386 = memref.load %arg5[%c79] : memref<81xf32, #tpu.memory_space<smem>>
    %387 = vector.broadcast %386 : f32 to vector<1x256xf32>
    %388 = arith.mulf %387, %353 : vector<1x256xf32>
    %389 = arith.addf %385, %388 : vector<1x256xf32>
    %c239_i32 = arith.constant 239 : i32
    %390 = tpu.dynamic_rotate %1 by %c239_i32 dim 1 : vector<3x256xf32>, i32 -> vector<3x256xf32>
    %c8_31 = arith.constant 8 : index
    %c0_32 = arith.constant 0 : index
    %391 = vector.load %arg2[%c8_31, %c0_32] : memref<9x256xf32, #tpu.memory_space<vmem>>, vector<1x256xf32>
    %392 = vector.broadcast %391 : vector<1x256xf32> to vector<3x256xf32>
    %393 = arith.mulf %390, %392 : vector<3x256xf32>
    %394 = vector.extract_strided_slice %393 {offsets = [0, 0], sizes = [1, 256], strides = [1, 1]} : vector<3x256xf32> to vector<1x256xf32>
    %395 = vector.extract_strided_slice %393 {offsets = [1, 0], sizes = [1, 256], strides = [1, 1]} : vector<3x256xf32> to vector<1x256xf32>
    %396 = vector.extract_strided_slice %393 {offsets = [2, 0], sizes = [1, 256], strides = [1, 1]} : vector<3x256xf32> to vector<1x256xf32>
    %c8_33 = arith.constant 8 : index
    %397 = memref.load %arg5[%c8_33] : memref<81xf32, #tpu.memory_space<smem>>
    %398 = vector.broadcast %397 : f32 to vector<1x256xf32>
    %399 = arith.mulf %398, %394 : vector<1x256xf32>
    %400 = arith.addf %365, %399 : vector<1x256xf32>
    %c17 = arith.constant 17 : index
    %401 = memref.load %arg5[%c17] : memref<81xf32, #tpu.memory_space<smem>>
    %402 = vector.broadcast %401 : f32 to vector<1x256xf32>
    %403 = arith.mulf %402, %395 : vector<1x256xf32>
    %404 = arith.addf %400, %403 : vector<1x256xf32>
    %c26 = arith.constant 26 : index
    %405 = memref.load %arg5[%c26] : memref<81xf32, #tpu.memory_space<smem>>
    %406 = vector.broadcast %405 : f32 to vector<1x256xf32>
    %407 = arith.mulf %406, %396 : vector<1x256xf32>
    %408 = arith.addf %404, %407 : vector<1x256xf32>
    %c35 = arith.constant 35 : index
    %409 = memref.load %arg5[%c35] : memref<81xf32, #tpu.memory_space<smem>>
    %410 = vector.broadcast %409 : f32 to vector<1x256xf32>
    %411 = arith.mulf %410, %394 : vector<1x256xf32>
    %412 = arith.addf %377, %411 : vector<1x256xf32>
    %c44 = arith.constant 44 : index
    %413 = memref.load %arg5[%c44] : memref<81xf32, #tpu.memory_space<smem>>
    %414 = vector.broadcast %413 : f32 to vector<1x256xf32>
    %415 = arith.mulf %414, %395 : vector<1x256xf32>
    %416 = arith.addf %412, %415 : vector<1x256xf32>
    %c53 = arith.constant 53 : index
    %417 = memref.load %arg5[%c53] : memref<81xf32, #tpu.memory_space<smem>>
    %418 = vector.broadcast %417 : f32 to vector<1x256xf32>
    %419 = arith.mulf %418, %396 : vector<1x256xf32>
    %420 = arith.addf %416, %419 : vector<1x256xf32>
    %c62 = arith.constant 62 : index
    %421 = memref.load %arg5[%c62] : memref<81xf32, #tpu.memory_space<smem>>
    %422 = vector.broadcast %421 : f32 to vector<1x256xf32>
    %423 = arith.mulf %422, %394 : vector<1x256xf32>
    %424 = arith.addf %389, %423 : vector<1x256xf32>
    %c71 = arith.constant 71 : index
    %425 = memref.load %arg5[%c71] : memref<81xf32, #tpu.memory_space<smem>>
    %426 = vector.broadcast %425 : f32 to vector<1x256xf32>
    %427 = arith.mulf %426, %395 : vector<1x256xf32>
    %428 = arith.addf %424, %427 : vector<1x256xf32>
    %c80 = arith.constant 80 : index
    %429 = memref.load %arg5[%c80] : memref<81xf32, #tpu.memory_space<smem>>
    %430 = vector.broadcast %429 : f32 to vector<1x256xf32>
    %431 = arith.mulf %430, %396 : vector<1x256xf32>
    %432 = arith.addf %428, %431 : vector<1x256xf32>
    %433 = tpu.concatenate %28, %40, %52 in 0 : vector<1x256xf32>, vector<1x256xf32>, vector<1x256xf32> -> vector<3x256xf32>
    %c0_34 = arith.constant 0 : index
    %c0_35 = arith.constant 0 : index
    %c0_36 = arith.constant 0 : index
    %434 = vector.load %arg7[%c0_34, %c0_35, %c0_36] : memref<1x3x256xf32, #tpu.memory_space<vmem>>, vector<1x3x256xf32>
    %435 = vector.shape_cast %434 : vector<1x3x256xf32> to vector<3x256xf32>
    %436 = vector.shape_cast %433 : vector<3x256xf32> to vector<1x3x256xf32>
    tpu.vector_store %arg7[%c0_34, %c0_35, %c0_36], %436 {strides = array<i32>} : memref<1x3x256xf32, #tpu.memory_space<vmem>>, vector<1x3x256xf32>,
    %437 = tpu.concatenate %408, %420, %432 in 0 : vector<1x256xf32>, vector<1x256xf32>, vector<1x256xf32> -> vector<3x256xf32>
    %c0_37 = arith.constant 0 : index
    %c0_38 = arith.constant 0 : index
    %c0_39 = arith.constant 0 : index
    %438 = vector.load %arg8[%c0_37, %c0_38, %c0_39] : memref<1x3x256xf32, #tpu.memory_space<vmem>>, vector<1x3x256xf32>
    %439 = vector.shape_cast %438 : vector<1x3x256xf32> to vector<3x256xf32>
    %440 = vector.shape_cast %437 : vector<3x256xf32> to vector<1x3x256xf32>
    tpu.vector_store %arg8[%c0_37, %c0_38, %c0_39], %440 {strides = array<i32>} : memref<1x3x256xf32, #tpu.memory_space<vmem>>, vector<1x3x256xf32>,
    return
  }
  func.func @transform_0(%arg0: i32) -> (i32, i32, i32) {
    %c0_i32 = arith.constant 0 : i32
    %c0_i32_0 = arith.constant 0 : i32
    %c0_i32_1 = arith.constant 0 : i32
    return %arg0, %c0_i32, %c0_i32_0 : i32, i32, i32
  }
  func.func @transform_1(%arg0: i32) -> (i32, i32) {
    %c0_i32 = arith.constant 0 : i32
    %c0_i32_0 = arith.constant 0 : i32
    %c0_i32_1 = arith.constant 0 : i32
    return %c0_i32, %c0_i32_0 : i32, i32
  }
  func.func @transform_2(%arg0: i32) -> i32 {
    %c0_i32 = arith.constant 0 : i32
    %c0_i32_0 = arith.constant 0 : i32
    return %c0_i32 : i32
  }
  func.func @transform_3(%arg0: i32) -> i32 {
    %c0_i32 = arith.constant 0 : i32
    %c0_i32_0 = arith.constant 0 : i32
    return %c0_i32 : i32
  }
  func.func @transform_4(%arg0: i32) -> i32 {
    %c0_i32 = arith.constant 0 : i32
    %c0_i32_0 = arith.constant 0 : i32
    return %c0_i32 : i32
  }
  func.func @transform_5(%arg0: i32) -> i32 {
    %c0_i32 = arith.constant 0 : i32
    %c0_i32_0 = arith.constant 0 : i32
    return %c0_i32 : i32
  }
  func.func @transform_6(%arg0: i32) -> (i32, i32, i32) {
    %c0_i32 = arith.constant 0 : i32
    %c0_i32_0 = arith.constant 0 : i32
    %c0_i32_1 = arith.constant 0 : i32
    return %arg0, %c0_i32, %c0_i32_0 : i32, i32, i32
  }
  func.func @transform_7(%arg0: i32) -> (i32, i32, i32) {
    %c0_i32 = arith.constant 0 : i32
    %c0_i32_0 = arith.constant 0 : i32
    %c0_i32_1 = arith.constant 0 : i32
    return %arg0, %c0_i32, %c0_i32_0 : i32, i32, i32
  }
}

</mosaic_0001>

<llo_original>
// kernel: edge_detection_forward.1
$region0: #{edge_detection_forward.1}
  #allocation0 [shape = 'u32[]', space=smem, size = 0x4, offset = 0x4, fixed_abs, tag = 'smem constant byte address 0x4 - core index']
  #allocation1 [shape = 'u32[144,128]{1,0:T(1,128)}', space=vmem, size = 0x12000, scoped, tag = 'internal scratch']
  %s0 = inlined_call_operand.vmem [shape: f32[2,3,256], index: 0, kind: input, shape index: {}]
  %s1 = inlined_call_operand.vmem [shape: f32[9,256], index: 1, kind: input, shape index: {}]
  %s2 = inlined_call_operand.vmem [shape: f32[9], index: 2, kind: input, shape index: {}]
  %s3 = inlined_call_operand.vmem [shape: f32[3], index: 3, kind: input, shape index: {}]
  %s4 = inlined_call_operand.vmem [shape: f32[81], index: 4, kind: input, shape index: {}]
  %s5 = inlined_call_operand.vmem [shape: f32[3], index: 5, kind: input, shape index: {}]
  %s6 = inlined_call_operand.vmem [shape: f32[2,3,256], index: 6, kind: output, shape index: {0}]
  %s7 = inlined_call_operand.vmem [shape: f32[2,3,256], index: 7, kind: output, shape index: {1}]
  %8 = xla_tuple %s6, %s7
  %s9 = sld [smem:[#allocation0]]
  $region81: #{edge_detection_forward.1} parent=0
    _
  %s11 = ssub.s32 1, %s9
  %s12 = scalar_select 0, %s11, %s9
  $region1: #{edge_detection_forward.1} parent=0
    #allocation2 [shape = 'u8[512]{0}', space=smem, size = 0x200, scoped, tag = 'input window, operand 2, single buffered']
    #allocation3 [shape = 's32[2]{0}', space=sflag, size = 0x8, scoped, tag = 'scoped memory for edge_detection_forward.1']
    #allocation4 [shape = 'u8[512]{0}', space=smem, size = 0x200, scoped, tag = 'input window, operand 3, single buffered']
    #allocation5 [shape = 's32[1]{0}', space=sflag, size = 0x4, scoped, tag = 'scoped memory for edge_detection_forward.1']
    #allocation6 [shape = 'u8[512]{0}', space=smem, size = 0x200, scoped, tag = 'input window, operand 4, single buffered']
    #allocation7 [shape = 'u8[512]{0}', space=smem, size = 0x200, scoped, tag = 'input window, operand 5, single buffered']
    #allocation8 [shape = 's32[1]{0}', space=sflag, size = 0x4, scoped, tag = 'scoped memory for edge_detection_forward.1']
    %13 = vsyncpa [#allocation3], 0
    %14 = vsyncpa [#allocation5], 0
    %15 = vsyncpa [#allocation8], 0
    loop: start=0, step=1, limit=4
    $region2: #{edge_detection_forward.1} parent=1 // loop_pre_header
      _
    $region3: #{edge_detection_forward.1} parent=1 // loop_header
      %s17 = sphi 0, %s21
      %p18 = scmp.ge.s32.totalorder %s17, 4
      %s27 = sphi 0, %s29
      %s30 = sphi 0, %s27
      %s31 = sphi 0, %s30
      %s47 = sphi 0, %s31
      %s51 = sphi 0, %s51
      %s53 = sphi 0, %s51
      %s54 = sphi 0, %s53
      %s68 = sphi 0, %s54
      %s72 = sphi 0, %s72
      %s74 = sphi 0, %s72
      %s75 = sphi 0, %s74
      %s89 = sphi 0, %s75
      %s93 = sphi 0, %s93
      %s95 = sphi 0, %s93
      %s96 = sphi 0, %s95
      %s110 = sphi 0, %s96
      %s114 = sphi 0, %s114
      %s116 = sphi 0, %s114
      %s117 = sphi 0, %s116
      %s131 = sphi 0, %s117
      %s135 = sphi 0, %s135
      %s137 = sphi 0, %s135
      %s138 = sphi 0, %s137
      %s152 = sphi 0, %s138
      %s158 = sphi 0, %s160
      %s161 = sphi 0, %s158
      %s162 = sphi 0, %s161
      %s178 = sphi 0, %s162
      %s184 = sphi 0, %s186
      %s187 = sphi 0, %s184
      %s188 = sphi 0, %s187
      %s204 = sphi 0, %s188
    $region4: #{edge_detection_forward.1} parent=1 // loop_header_branch
      %20 = sbr.rel (%p18) target = $region8
    $region5: #{edge_detection_forward.1} parent=1 // loop_body
      %s22 = ssub.s32 %s17, 1
      %s23 = ssub.s32 %s17, 2
      %s24 = sadd.s32 %s17, 1
      %s25 = ssub.s32 %s17, %s24
      %p26 = scmp.eq.s32.totalorder %s25, 0
      %s28 = sadd.s32 %s27, 1
      %s29 = scalar_select %p26, %s27, %s28
      %p32 = pneg %p26
      %p33 = scmp.eq.s32.totalorder %s17, 1
      %p34 = por %p32, %p33
      %p35 = scmp.ne.s32.totalorder %s27, %s30
      %p36 = scmp.eq.s32.totalorder %s17, 0
      %p37 = por %p35, %p36
      %p38 = scmp.ne.s32.totalorder %s27, %s30
      %p39 = scmp.eq.s32.totalorder %s22, 1
      %p40 = por %p38, %p39
      %p41 = scmp.ne.s32.totalorder %s30, %s31
      %p42 = scmp.eq.s32.totalorder %s22, 0
      %p43 = por %p41, %p42
      %p44 = scmp.ne.s32.totalorder %s30, %s31
      %p45 = scmp.eq.s32.totalorder %s23, 1
      %p46 = por %p44, %p45
      %p48 = scmp.ne.s32.totalorder %s31, %s47
      %p49 = scmp.eq.s32.totalorder %s23, 0
      %p50 = por %p48, %p49
      %s52 = sadd.s32 %s51, 1
      %p55 = scmp.eq.s32.totalorder %s17, 1
      %p56 = scmp.ne.s32.totalorder %s51, %s53
      %p57 = scmp.eq.s32.totalorder %s17, 0
      %p58 = por %p56, %p57
      %p59 = scmp.ne.s32.totalorder %s51, %s53
      %p60 = scmp.eq.s32.totalorder %s22, 1
      %p61 = por %p59, %p60
      %p62 = scmp.ne.s32.totalorder %s53, %s54
      %p63 = scmp.eq.s32.totalorder %s22, 0
      %p64 = por %p62, %p63
      %p65 = scmp.ne.s32.totalorder %s53, %s54
      %p66 = scmp.eq.s32.totalorder %s23, 1
      %p67 = por %p65, %p66
      %p69 = scmp.ne.s32.totalorder %s54, %s68
      %p70 = scmp.eq.s32.totalorder %s23, 0
      %p71 = por %p69, %p70
      %s73 = sadd.s32 %s72, 1
      %p76 = scmp.eq.s32.totalorder %s17, 1
      %p77 = scmp.ne.s32.totalorder %s72, %s74
      %p78 = scmp.eq.s32.totalorder %s17, 0
      %p79 = por %p77, %p78
      %p80 = scmp.ne.s32.totalorder %s72, %s74
      %p81 = scmp.eq.s32.totalorder %s22, 1
      %p82 = por %p80, %p81
      %p83 = scmp.ne.s32.totalorder %s74, %s75
      %p84 = scmp.eq.s32.totalorder %s22, 0
      %p85 = por %p83, %p84
      %p86 = scmp.ne.s32.totalorder %s74, %s75
      %p87 = scmp.eq.s32.totalorder %s23, 1
      %p88 = por %p86, %p87
      %p90 = scmp.ne.s32.totalorder %s75, %s89
      %p91 = scmp.eq.s32.totalorder %s23, 0
      %p92 = por %p90, %p91
      %s94 = sadd.s32 %s93, 1
      %p97 = scmp.eq.s32.totalorder %s17, 1
      %p98 = scmp.ne.s32.totalorder %s93, %s95
      %p99 = scmp.eq.s32.totalorder %s17, 0
      %p100 = por %p98, %p99
      %p101 = scmp.ne.s32.totalorder %s93, %s95
      %p102 = scmp.eq.s32.totalorder %s22, 1
      %p103 = por %p101, %p102
      %p104 = scmp.ne.s32.totalorder %s95, %s96
      %p105 = scmp.eq.s32.totalorder %s22, 0
      %p106 = por %p104, %p105
      %p107 = scmp.ne.s32.totalorder %s95, %s96
      %p108 = scmp.eq.s32.totalorder %s23, 1
      %p109 = por %p107, %p108
      %p111 = scmp.ne.s32.totalorder %s96, %s110
      %p112 = scmp.eq.s32.totalorder %s23, 0
      %p113 = por %p111, %p112
      %s115 = sadd.s32 %s114, 1
      %p118 = scmp.eq.s32.totalorder %s17, 1
      %p119 = scmp.ne.s32.totalorder %s114, %s116
      %p120 = scmp.eq.s32.totalorder %s17, 0
      %p121 = por %p119, %p120
      %p122 = scmp.ne.s32.totalorder %s114, %s116
      %p123 = scmp.eq.s32.totalorder %s22, 1
      %p124 = por %p122, %p123
      %p125 = scmp.ne.s32.totalorder %s116, %s117
      %p126 = scmp.eq.s32.totalorder %s22, 0
      %p127 = por %p125, %p126
      %p128 = scmp.ne.s32.totalorder %s116, %s117
      %p129 = scmp.eq.s32.totalorder %s23, 1
      %p130 = por %p128, %p129
      %p132 = scmp.ne.s32.totalorder %s117, %s131
      %p133 = scmp.eq.s32.totalorder %s23, 0
      %p134 = por %p132, %p133
      %s136 = sadd.s32 %s135, 1
      %p139 = scmp.eq.s32.totalorder %s17, 1
      %p140 = scmp.ne.s32.totalorder %s135, %s137
      %p141 = scmp.eq.s32.totalorder %s17, 0
      %p142 = por %p140, %p141
      %p143 = scmp.ne.s32.totalorder %s135, %s137
      %p144 = scmp.eq.s32.totalorder %s22, 1
      %p145 = por %p143, %p144
      %p146 = scmp.ne.s32.totalorder %s137, %s138
      %p147 = scmp.eq.s32.totalorder %s22, 0
      %p148 = por %p146, %p147
      %p149 = scmp.ne.s32.totalorder %s137, %s138
      %p150 = scmp.eq.s32.totalorder %s23, 1
      %p151 = por %p149, %p150
      %p153 = scmp.ne.s32.totalorder %s138, %s152
      %p154 = scmp.eq.s32.totalorder %s23, 0
      %p155 = por %p153, %p154
      %s156 = ssub.s32 %s17, %s24
      %p157 = scmp.eq.s32.totalorder %s156, 0
      %s159 = sadd.s32 %s158, 1
      %s160 = scalar_select %p157, %s158, %s159
      %p163 = pneg %p157
      %p164 = scmp.eq.s32.totalorder %s17, 1
      %p165 = por %p163, %p164
      %p166 = scmp.ne.s32.totalorder %s158, %s161
      %p167 = scmp.eq.s32.totalorder %s17, 0
      %p168 = por %p166, %p167
      %p169 = scmp.ne.s32.totalorder %s158, %s161
      %p170 = scmp.eq.s32.totalorder %s22, 1
      %p171 = por %p169, %p170
      %p172 = scmp.ne.s32.totalorder %s161, %s162
      %p173 = scmp.eq.s32.totalorder %s22, 0
      %p174 = por %p172, %p173
      %p175 = scmp.ne.s32.totalorder %s161, %s162
      %p176 = scmp.eq.s32.totalorder %s23, 1
      %p177 = por %p175, %p176
      %p179 = scmp.ne.s32.totalorder %s162, %s178
      %p180 = scmp.eq.s32.totalorder %s23, 0
      %p181 = por %p179, %p180
      %s182 = ssub.s32 %s17, %s24
      %p183 = scmp.eq.s32.totalorder %s182, 0
      %s185 = sadd.s32 %s184, 1
      %s186 = scalar_select %p183, %s184, %s185
      %p189 = pneg %p183
      %p190 = scmp.eq.s32.totalorder %s17, 1
      %p191 = por %p189, %p190
      %p192 = scmp.ne.s32.totalorder %s184, %s187
      %p193 = scmp.eq.s32.totalorder %s17, 0
      %p194 = por %p192, %p193
      %p195 = scmp.ne.s32.totalorder %s184, %s187
      %p196 = scmp.eq.s32.totalorder %s22, 1
      %p197 = por %p195, %p196
      %p198 = scmp.ne.s32.totalorder %s187, %s188
      %p199 = scmp.eq.s32.totalorder %s22, 0
      %p200 = por %p198, %p199
      %p201 = scmp.ne.s32.totalorder %s187, %s188
      %p202 = scmp.eq.s32.totalorder %s23, 1
      %p203 = por %p201, %p202
      %p205 = scmp.ne.s32.totalorder %s188, %s204
      %p206 = scmp.eq.s32.totalorder %s23, 0
      %p207 = por %p205, %p206
      %p208 = scmp.le.s32.totalorder 1, %s17
      %p209 = scmp.lt.s32.totalorder %s17, 3
      %p210 = pnand %p208, %p209
      %p211 = pneg %p210
      // Predicated region
      $region9: #{edge_detection_forward.1} parent=5 // pred_check
        _
      $region10: #{edge_detection_forward.1} parent=5 // pred_check_branch
        %213 = sbr.rel (%p210) target = $region12
      $region11: #{edge_detection_forward.1} parent=5 // pred_region
        %s214 = ssub.s32 %s17, 1
        // Predicated region
        $region13: #{edge_detection_forward.1} parent=11 // pred_check
          %p215 = pneg %p64
        $region14: #{edge_detection_forward.1} parent=11 // pred_check_branch
          %217 = sbr.rel (%p215) target = $region16
        $region15: #{edge_detection_forward.1} parent=11 // pred_region
          _
        $region16: #{edge_detection_forward.1} parent=11 // pred_fallthru
          _
        // Predicated region
        $region17: #{edge_detection_forward.1} parent=11 // pred_check
          %p218 = pneg %p85
        $region18: #{edge_detection_forward.1} parent=11 // pred_check_branch
          %220 = sbr.rel (%p218) target = $region20
        $region19: #{edge_detection_forward.1} parent=11 // pred_region
          %s222 = ssub.s32 16, 16
          %223 = vsyncadd [#allocation3], %s222
          %s225 = sshll.u32 %s2, 4
          %s226 = int_to_ptr.vmem [resolvable:$true] %s225
          %228 = dma.vmem_to_smem %s226, 16, [#allocation2], [#allocation3]
        $region20: #{edge_detection_forward.1} parent=11 // pred_fallthru
          _
        // Predicated region
        $region21: #{edge_detection_forward.1} parent=11 // pred_check
          %p229 = pneg %p106
        $region22: #{edge_detection_forward.1} parent=11 // pred_check_branch
          %231 = sbr.rel (%p229) target = $region24
        $region23: #{edge_detection_forward.1} parent=11 // pred_region
          %s233 = ssub.s32 16, 16
          %234 = vsyncadd [#allocation5], %s233
          %s236 = sshll.u32 %s3, 4
          %s237 = int_to_ptr.vmem [resolvable:$true] %s236
          %239 = dma.vmem_to_smem %s237, 16, [#allocation4], [#allocation5]
        $region24: #{edge_detection_forward.1} parent=11 // pred_fallthru
          _
        // Predicated region
        $region25: #{edge_detection_forward.1} parent=11 // pred_check
          %p240 = pneg %p127
        $region26: #{edge_detection_forward.1} parent=11 // pred_check_branch
          %242 = sbr.rel (%p240) target = $region28
        $region27: #{edge_detection_forward.1} parent=11 // pred_region
          %s244 = ssub.s32 16, 16
          %245 = vsyncadd [#allocation5], %s244
          %s247 = sshll.u32 %s4, 4
          %s248 = int_to_ptr.vmem [resolvable:$true] %s247
          %250 = dma.vmem_to_smem %s248, 16, [#allocation6], [#allocation5]
        $region28: #{edge_detection_forward.1} parent=11 // pred_fallthru
          _
        // Predicated region
        $region29: #{edge_detection_forward.1} parent=11 // pred_check
          %p251 = pneg %p148
        $region30: #{edge_detection_forward.1} parent=11 // pred_check_branch
          %253 = sbr.rel (%p251) target = $region32
        $region31: #{edge_detection_forward.1} parent=11 // pred_region
          %s255 = ssub.s32 16, 16
          %256 = vsyncadd [#allocation8], %s255
          %s258 = sshll.u32 %s5, 4
          %s259 = int_to_ptr.vmem [resolvable:$true] %s258
          %261 = dma.vmem_to_smem %s259, 16, [#allocation7], [#allocation8]
        $region32: #{edge_detection_forward.1} parent=11 // pred_fallthru
          _
      $region12: #{edge_detection_forward.1} parent=5 // pred_fallthru
        _
      %p262 = scmp.lt.s32.totalorder %s17, 2
      // Predicated region
      $region33: #{edge_detection_forward.1} parent=5 // pred_check
        %p263 = pneg %p262
      $region34: #{edge_detection_forward.1} parent=5 // pred_check_branch
        %265 = sbr.rel (%p263) target = $region36
      $region35: #{edge_detection_forward.1} parent=5 // pred_region
        // Predicated region
        $region37: #{edge_detection_forward.1} parent=35 // pred_check
          %p266 = pneg %p37
        $region38: #{edge_detection_forward.1} parent=35 // pred_check_branch
          %268 = sbr.rel (%p266) target = $region40
        $region39: #{edge_detection_forward.1} parent=35 // pred_region
          %p269 = scmp.lt.s32.totalorder %s17, 1
          %s270 = scalar_select %p269, %s17, 1
          %s271 = smul.addr %s270, 2
          %s272 = smul.addr %s271, 4
          %s273 = scalar_lea.vmem %s0, %s272
        $region40: #{edge_detection_forward.1} parent=35 // pred_fallthru
          _
      $region36: #{edge_detection_forward.1} parent=5 // pred_fallthru
        _
      %p274 = scmp.le.s32.totalorder 1, %s17
      %p275 = scmp.lt.s32.totalorder %s17, 3
      %p276 = pnand %p274, %p275
      %p277 = pneg %p276
      // Predicated region
      $region41: #{edge_detection_forward.1} parent=5 // pred_check
        _
      $region42: #{edge_detection_forward.1} parent=5 // pred_check_branch
        %279 = sbr.rel (%p276) target = $region44
      $region43: #{edge_detection_forward.1} parent=5 // pred_region
        %s280 = ssub.s32 %s17, 1
        // Predicated region
        $region45: #{edge_detection_forward.1} parent=43 // pred_check
          %p281 = pneg %p85
        $region46: #{edge_detection_forward.1} parent=43 // pred_check_branch
          %283 = sbr.rel (%p281) target = $region48
        $region47: #{edge_detection_forward.1} parent=43 // pred_region
          %284 = dma.done [#allocation3], 16
        $region48: #{edge_detection_forward.1} parent=43 // pred_fallthru
          _
        // Predicated region
        $region49: #{edge_detection_forward.1} parent=43 // pred_check
          %p285 = pneg %p106
        $region50: #{edge_detection_forward.1} parent=43 // pred_check_branch
          %287 = sbr.rel (%p285) target = $region52
        $region51: #{edge_detection_forward.1} parent=43 // pred_region
          %288 = dma.done [#allocation5], 16
        $region52: #{edge_detection_forward.1} parent=43 // pred_fallthru
          _
        // Predicated region
        $region53: #{edge_detection_forward.1} parent=43 // pred_check
          %p289 = pneg %p127
        $region54: #{edge_detection_forward.1} parent=43 // pred_check_branch
          %291 = sbr.rel (%p289) target = $region56
        $region55: #{edge_detection_forward.1} parent=43 // pred_region
          %292 = dma.done [#allocation5], 16
        $region56: #{edge_detection_forward.1} parent=43 // pred_fallthru
          _
        // Predicated region
        $region57: #{edge_detection_forward.1} parent=43 // pred_check
          %p293 = pneg %p148
        $region58: #{edge_detection_forward.1} parent=43 // pred_check_branch
          %295 = sbr.rel (%p293) target = $region60
        $region59: #{edge_detection_forward.1} parent=43 // pred_region
          %296 = dma.done [#allocation8], 16
        $region60: #{edge_detection_forward.1} parent=43 // pred_fallthru
          _
        %297 = sfence
        %p298 = scmp.lt.s32.totalorder %s22, 1
        %s299 = scalar_select %p298, %s22, 1
        %s300 = smul.addr %s299, 2
        %s301 = smul.addr %s300, 4
        %s302 = scalar_lea.vmem %s0, %s301
        %p303 = pneg %p43
        %p304 = pneg %p40
        %p305 = pneg %p64
        %p306 = pneg %p61
        %p307 = pneg %p85
        %p308 = pneg %p82
        %p309 = pneg %p106
        %p310 = pneg %p103
        %p311 = pneg %p127
        %p312 = pneg %p124
        %p313 = pneg %p148
        %p314 = pneg %p145
        %p315 = pneg %p174
        %p316 = pneg %p171
        %p317 = scmp.lt.s32.totalorder %s22, 1
        %s318 = scalar_select %p317, %s22, 1
        %s319 = smul.addr %s318, 2
        %s320 = smul.addr %s319, 4
        %s321 = scalar_lea.vmem %s6, %s320
        %p322 = pneg %p200
        %p323 = pneg %p197
        %p324 = scmp.lt.s32.totalorder %s22, 1
        %s325 = scalar_select %p324, %s22, 1
        %s326 = smul.addr %s325, 2
        %s327 = smul.addr %s326, 4
        %s328 = scalar_lea.vmem %s7, %s327
        %p329 = scmp.lt.s32.totalorder %s22, 1
        %s330 = scalar_select %p329, %s22, 1
        %s331 = smul.addr %s330, 2
        %s332 = smul.addr %s331, 4
        %s333 = scalar_lea.vmem %s0, %s332
        %p334 = scmp.lt.s32.totalorder %s22, 1
        %s335 = scalar_select %p334, %s22, 1
        %s336 = smul.addr %s335, 2
        %s337 = smul.addr %s336, 4
        %s338 = scalar_lea.vmem %s6, %s337
        %p339 = scmp.lt.s32.totalorder %s22, 1
        %s340 = scalar_select %p339, %s22, 1
        %s341 = smul.addr %s340, 2
        %s342 = smul.addr %s341, 4
        %s343 = scalar_lea.vmem %s7, %s342
        %v344 = vld [vmem:[%s333] sm:$0x77]
        %s345 = sld [smem:[#allocation4]]
        %v346 = vstv %s345
        %s347 = sld [smem:[#allocation4 + $0x1]]
        %v348 = vstv %s347
        %s349 = sld [smem:[#allocation4 + $0x2]]
        %v350 = vstv %s349
        %s351 = sld [smem:[#allocation7]]
        %v352 = vstv %s351
        %s353 = sld [smem:[#allocation7 + $0x1]]
        %v354 = vstv %s353
        %s355 = sld [smem:[#allocation7 + $0x2]]
        %v356 = vstv %s355
        %s357 = sld [smem:[#allocation2]]
        %v358 = vstv %s357
        %v359 = vmul.f32 %v358, %v344
        %v360 = vadd.f32 %v346, %v359
        %s361 = sld [smem:[#allocation2 + $0x1]]
        %v362 = vstv %s361
        %v363 = vmul.f32 %v362, %v344
        %v365 = vrot.slane %v363, 5
        %v366 = vrot.slane %v365, 4
        %v368 = vadd.f32 %v360, %v366
        %s369 = sld [smem:[#allocation2 + $0x2]]
        %v370 = vstv %s369
        %v371 = vmul.f32 %v370, %v344
        %v373 = vrot.slane %v371, 6
        %v374 = vrot.slane %v373, 4
        %v376 = vadd.f32 %v368, %v374
        %s377 = sld [smem:[#allocation2 + $0x3]]
        %v378 = vstv %s377
        %v379 = vmul.f32 %v378, %v344
        %v380 = vadd.f32 %v348, %v379
        %s381 = sld [smem:[#allocation2 + $0x4]]
        %v382 = vstv %s381
        %v383 = vmul.f32 %v382, %v344
        %v385 = vrot.slane %v383, 5
        %v386 = vrot.slane %v385, 4
        %v388 = vadd.f32 %v380, %v386
        %s389 = sld [smem:[#allocation2 + $0x5]]
        %v390 = vstv %s389
        %v391 = vmul.f32 %v390, %v344
        %v393 = vrot.slane %v391, 6
        %v394 = vrot.slane %v393, 4
        %v396 = vadd.f32 %v388, %v394
        %s397 = sld [smem:[#allocation2 + $0x6]]
        %v398 = vstv %s397
        %v399 = vmul.f32 %v398, %v344
        %v400 = vadd.f32 %v350, %v399
        %s401 = sld [smem:[#allocation2 + $0x7]]
        %v402 = vstv %s401
        %v403 = vmul.f32 %v402, %v344
        %v405 = vrot.slane %v403, 5
        %v406 = vrot.slane %v405, 4
        %v408 = vadd.f32 %v400, %v406
        %s409 = sld [smem:[#allocation2 + $0x8]]
        %v410 = vstv %s409
        %v411 = vmul.f32 %v410, %v344
        %v413 = vrot.slane %v411, 6
        %v414 = vrot.slane %v413, 4
        %v416 = vadd.f32 %v408, %v414
        %v418 = vcombine.high %v344, %v344
        %420 = vrot.lane.b32.xlu0 %v344, 17
        %v421 = vpop.permute.xlu0 %420
        %422 = vrot.lane.b32.xlu0 %v418, 17
        %v423 = vpop.permute.xlu0 %422
        %v424 = vlaneseq
        %v425 = vand.u32 %v424, 127
        %vm426 = vcmp.lt.s32.totalorder %v425, 17
        %v427 = vsel %vm426, %v421, %v423
        %v428 = vsel %vm426, %v423, %v421
        %v429 = vld [vmem:[%s1] ss:$8 sm:$0x3]
        %v431 = vlaneseq
        %v432 = vshrl.u32 %v431, 7
        %v433 = vsub.s32 0, %v432
        %v434 = vrot.slane %v429, %v433
        %v435 = vlaneseq
        %v436 = vshrl.u32 %v435, 7
        %v437 = vsub.s32 1, %v436
        %v438 = vrot.slane %v429, %v437
        %v441 = vmul.f32 %v428, %v434
        %v442 = vmul.f32 %v427, %v438
        %s443 = sld [smem:[#allocation6]]
        %v444 = vstv %s443
        %v445 = vmul.f32 %v444, %v441
        %v446 = vmul.f32 %v444, %v442
        %v447 = vadd.f32 %v352, %v445
        %v448 = vadd.f32 %v352, %v446
        %s449 = sld [smem:[#allocation6 + $0x9]]
        %v450 = vstv %s449
        %v451 = vmul.f32 %v450, %v441
        %v452 = vmul.f32 %v450, %v442
        %v455 = vrot.slane %v451, 1
        %v456 = vrot.slane %v452, 1
        %v459 = vadd.f32 %v447, %v455
        %v460 = vadd.f32 %v448, %v456
        %s461 = sld [smem:[#allocation6 + $0x12]]
        %v462 = vstv %s461
        %v463 = vmul.f32 %v462, %v441
        %v464 = vmul.f32 %v462, %v442
        %v467 = vrot.slane %v463, 2
        %v468 = vrot.slane %v464, 2
        %v471 = vadd.f32 %v459, %v467
        %v472 = vadd.f32 %v460, %v468
        %s473 = sld [smem:[#allocation6 + $0x1b]]
        %v474 = vstv %s473
        %v475 = vmul.f32 %v474, %v441
        %v476 = vmul.f32 %v474, %v442
        %v477 = vadd.f32 %v354, %v475
        %v478 = vadd.f32 %v354, %v476
        %s479 = sld [smem:[#allocation6 + $0x24]]
        %v480 = vstv %s479
        %v481 = vmul.f32 %v480, %v441
        %v482 = vmul.f32 %v480, %v442
        %v485 = vrot.slane %v481, 1
        %v486 = vrot.slane %v482, 1
        %v489 = vadd.f32 %v477, %v485
        %v490 = vadd.f32 %v478, %v486
        %s491 = sld [smem:[#allocation6 + $0x2d]]
        %v492 = vstv %s491
        %v493 = vmul.f32 %v492, %v441
        %v494 = vmul.f32 %v492, %v442
        %v497 = vrot.slane %v493, 2
        %v498 = vrot.slane %v494, 2
        %v501 = vadd.f32 %v489, %v497
        %v502 = vadd.f32 %v490, %v498
        %s503 = sld [smem:[#allocation6 + $0x36]]
        %v504 = vstv %s503
        %v505 = vmul.f32 %v504, %v441
        %v506 = vmul.f32 %v504, %v442
        %v507 = vadd.f32 %v356, %v505
        %v508 = vadd.f32 %v356, %v506
        %s509 = sld [smem:[#allocation6 + $0x3f]]
        %v510 = vstv %s509
        %v511 = vmul.f32 %v510, %v441
        %v512 = vmul.f32 %v510, %v442
        %v515 = vrot.slane %v511, 1
        %v516 = vrot.slane %v512, 1
        %v519 = vadd.f32 %v507, %v515
        %v520 = vadd.f32 %v508, %v516
        %s521 = sld [smem:[#allocation6 + $0x48]]
        %v522 = vstv %s521
        %v523 = vmul.f32 %v522, %v441
        %v524 = vmul.f32 %v522, %v442
        %v527 = vrot.slane %v523, 2
        %v528 = vrot.slane %v524, 2
        %v531 = vadd.f32 %v519, %v527
        %v532 = vadd.f32 %v520, %v528
        %533 = vrot.lane.b32.xlu0 %v344, 16
        %v534 = vpop.permute.xlu0 %533
        %535 = vrot.lane.b32.xlu0 %v418, 16
        %v536 = vpop.permute.xlu0 %535
        %vm537 = vcmp.lt.s32.totalorder %v425, 16
        %v538 = vsel %vm537, %v534, %v536
        %v539 = vsel %vm537, %v536, %v534
        %s540 = scalar_lea.vmem %s1, 1
        %v541 = vld [vmem:[%s540] ss:$8 sm:$0x3]
        %v543 = vlaneseq
        %v544 = vshrl.u32 %v543, 7
        %v545 = vsub.s32 0, %v544
        %v546 = vrot.slane %v541, %v545
        %v547 = vlaneseq
        %v548 = vshrl.u32 %v547, 7
        %v549 = vsub.s32 1, %v548
        %v550 = vrot.slane %v541, %v549
        %v553 = vmul.f32 %v539, %v546
        %v554 = vmul.f32 %v538, %v550
        %s555 = sld [smem:[#allocation6 + $0x1]]
        %v556 = vstv %s555
        %v557 = vmul.f32 %v556, %v553
        %v558 = vmul.f32 %v556, %v554
        %v559 = vadd.f32 %v471, %v557
        %v560 = vadd.f32 %v472, %v558
        %s561 = sld [smem:[#allocation6 + $0xa]]
        %v562 = vstv %s561
        %v563 = vmul.f32 %v562, %v553
        %v564 = vmul.f32 %v562, %v554
        %v567 = vrot.slane %v563, 1
        %v568 = vrot.slane %v564, 1
        %v571 = vadd.f32 %v559, %v567
        %v572 = vadd.f32 %v560, %v568
        %s573 = sld [smem:[#allocation6 + $0x13]]
        %v574 = vstv %s573
        %v575 = vmul.f32 %v574, %v553
        %v576 = vmul.f32 %v574, %v554
        %v579 = vrot.slane %v575, 2
        %v580 = vrot.slane %v576, 2
        %v583 = vadd.f32 %v571, %v579
        %v584 = vadd.f32 %v572, %v580
        %s585 = sld [smem:[#allocation6 + $0x1c]]
        %v586 = vstv %s585
        %v587 = vmul.f32 %v586, %v553
        %v588 = vmul.f32 %v586, %v554
        %v589 = vadd.f32 %v501, %v587
        %v590 = vadd.f32 %v502, %v588
        %s591 = sld [smem:[#allocation6 + $0x25]]
        %v592 = vstv %s591
        %v593 = vmul.f32 %v592, %v553
        %v594 = vmul.f32 %v592, %v554
        %v597 = vrot.slane %v593, 1
        %v598 = vrot.slane %v594, 1
        %v601 = vadd.f32 %v589, %v597
        %v602 = vadd.f32 %v590, %v598
        %s603 = sld [smem:[#allocation6 + $0x2e]]
        %v604 = vstv %s603
        %v605 = vmul.f32 %v604, %v553
        %v606 = vmul.f32 %v604, %v554
        %v609 = vrot.slane %v605, 2
        %v610 = vrot.slane %v606, 2
        %v613 = vadd.f32 %v601, %v609
        %v614 = vadd.f32 %v602, %v610
        %s615 = sld [smem:[#allocation6 + $0x37]]
        %v616 = vstv %s615
        %v617 = vmul.f32 %v616, %v553
        %v618 = vmul.f32 %v616, %v554
        %v619 = vadd.f32 %v531, %v617
        %v620 = vadd.f32 %v532, %v618
        %s621 = sld [smem:[#allocation6 + $0x40]]
        %v622 = vstv %s621
        %v623 = vmul.f32 %v622, %v553
        %v624 = vmul.f32 %v622, %v554
        %v627 = vrot.slane %v623, 1
        %v628 = vrot.slane %v624, 1
        %v631 = vadd.f32 %v619, %v627
        %v632 = vadd.f32 %v620, %v628
        %s633 = sld [smem:[#allocation6 + $0x49]]
        %v634 = vstv %s633
        %v635 = vmul.f32 %v634, %v553
        %v636 = vmul.f32 %v634, %v554
        %v639 = vrot.slane %v635, 2
        %v640 = vrot.slane %v636, 2
        %v643 = vadd.f32 %v631, %v639
        %v644 = vadd.f32 %v632, %v640
        %645 = vrot.lane.b32.xlu0 %v344, 15
        %v646 = vpop.permute.xlu0 %645
        %647 = vrot.lane.b32.xlu0 %v418, 15
        %v648 = vpop.permute.xlu0 %647
        %vm649 = vcmp.lt.s32.totalorder %v425, 15
        %v650 = vsel %vm649, %v646, %v648
        %v651 = vsel %vm649, %v648, %v646
        %s652 = scalar_lea.vmem %s1, 2
        %v653 = vld [vmem:[%s652] ss:$8 sm:$0x3]
        %v655 = vlaneseq
        %v656 = vshrl.u32 %v655, 7
        %v657 = vsub.s32 0, %v656
        %v658 = vrot.slane %v653, %v657
        %v659 = vlaneseq
        %v660 = vshrl.u32 %v659, 7
        %v661 = vsub.s32 1, %v660
        %v662 = vrot.slane %v653, %v661
        %v665 = vmul.f32 %v651, %v658
        %v666 = vmul.f32 %v650, %v662
        %s667 = sld [smem:[#allocation6 + $0x2]]
        %v668 = vstv %s667
        %v669 = vmul.f32 %v668, %v665
        %v670 = vmul.f32 %v668, %v666
        %v671 = vadd.f32 %v583, %v669
        %v672 = vadd.f32 %v584, %v670
        %s673 = sld [smem:[#allocation6 + $0xb]]
        %v674 = vstv %s673
        %v675 = vmul.f32 %v674, %v665
        %v676 = vmul.f32 %v674, %v666
        %v679 = vrot.slane %v675, 1
        %v680 = vrot.slane %v676, 1
        %v683 = vadd.f32 %v671, %v679
        %v684 = vadd.f32 %v672, %v680
        %s685 = sld [smem:[#allocation6 + $0x14]]
        %v686 = vstv %s685
        %v687 = vmul.f32 %v686, %v665
        %v688 = vmul.f32 %v686, %v666
        %v691 = vrot.slane %v687, 2
        %v692 = vrot.slane %v688, 2
        %v695 = vadd.f32 %v683, %v691
        %v696 = vadd.f32 %v684, %v692
        %s697 = sld [smem:[#allocation6 + $0x1d]]
        %v698 = vstv %s697
        %v699 = vmul.f32 %v698, %v665
        %v700 = vmul.f32 %v698, %v666
        %v701 = vadd.f32 %v613, %v699
        %v702 = vadd.f32 %v614, %v700
        %s703 = sld [smem:[#allocation6 + $0x26]]
        %v704 = vstv %s703
        %v705 = vmul.f32 %v704, %v665
        %v706 = vmul.f32 %v704, %v666
        %v709 = vrot.slane %v705, 1
        %v710 = vrot.slane %v706, 1
        %v713 = vadd.f32 %v701, %v709
        %v714 = vadd.f32 %v702, %v710
        %s715 = sld [smem:[#allocation6 + $0x2f]]
        %v716 = vstv %s715
        %v717 = vmul.f32 %v716, %v665
        %v718 = vmul.f32 %v716, %v666
        %v721 = vrot.slane %v717, 2
        %v722 = vrot.slane %v718, 2
        %v725 = vadd.f32 %v713, %v721
        %v726 = vadd.f32 %v714, %v722
        %s727 = sld [smem:[#allocation6 + $0x38]]
        %v728 = vstv %s727
        %v729 = vmul.f32 %v728, %v665
        %v730 = vmul.f32 %v728, %v666
        %v731 = vadd.f32 %v643, %v729
        %v732 = vadd.f32 %v644, %v730
        %s733 = sld [smem:[#allocation6 + $0x41]]
        %v734 = vstv %s733
        %v735 = vmul.f32 %v734, %v665
        %v736 = vmul.f32 %v734, %v666
        %v739 = vrot.slane %v735, 1
        %v740 = vrot.slane %v736, 1
        %v743 = vadd.f32 %v731, %v739
        %v744 = vadd.f32 %v732, %v740
        %s745 = sld [smem:[#allocation6 + $0x4a]]
        %v746 = vstv %s745
        %v747 = vmul.f32 %v746, %v665
        %v748 = vmul.f32 %v746, %v666
        %v751 = vrot.slane %v747, 2
        %v752 = vrot.slane %v748, 2
        %v755 = vadd.f32 %v743, %v751
        %v756 = vadd.f32 %v744, %v752
        %757 = vrot.lane.b32.xlu0 %v344, 1
        %v758 = vpop.permute.xlu0 %757
        %759 = vrot.lane.b32.xlu0 %v418, 1
        %v760 = vpop.permute.xlu0 %759
        %vm761 = vcmp.lt.s32.totalorder %v425, 1
        %v762 = vsel %vm761, %v758, %v760
        %v763 = vsel %vm761, %v760, %v758
        %s764 = scalar_lea.vmem %s1, 3
        %v765 = vld [vmem:[%s764] ss:$8 sm:$0x3]
        %v767 = vlaneseq
        %v768 = vshrl.u32 %v767, 7
        %v769 = vsub.s32 0, %v768
        %v770 = vrot.slane %v765, %v769
        %v771 = vlaneseq
        %v772 = vshrl.u32 %v771, 7
        %v773 = vsub.s32 1, %v772
        %v774 = vrot.slane %v765, %v773
        %v777 = vmul.f32 %v763, %v770
        %v778 = vmul.f32 %v762, %v774
        %s779 = sld [smem:[#allocation6 + $0x3]]
        %v780 = vstv %s779
        %v781 = vmul.f32 %v780, %v777
        %v782 = vmul.f32 %v780, %v778
        %v783 = vadd.f32 %v695, %v781
        %v784 = vadd.f32 %v696, %v782
        %s785 = sld [smem:[#allocation6 + $0xc]]
        %v786 = vstv %s785
        %v787 = vmul.f32 %v786, %v777
        %v788 = vmul.f32 %v786, %v778
        %v791 = vrot.slane %v787, 1
        %v792 = vrot.slane %v788, 1
        %v795 = vadd.f32 %v783, %v791
        %v796 = vadd.f32 %v784, %v792
        %s797 = sld [smem:[#allocation6 + $0x15]]
        %v798 = vstv %s797
        %v799 = vmul.f32 %v798, %v777
        %v800 = vmul.f32 %v798, %v778
        %v803 = vrot.slane %v799, 2
        %v804 = vrot.slane %v800, 2
        %v807 = vadd.f32 %v795, %v803
        %v808 = vadd.f32 %v796, %v804
        %s809 = sld [smem:[#allocation6 + $0x1e]]
        %v810 = vstv %s809
        %v811 = vmul.f32 %v810, %v777
        %v812 = vmul.f32 %v810, %v778
        %v813 = vadd.f32 %v725, %v811
        %v814 = vadd.f32 %v726, %v812
        %s815 = sld [smem:[#allocation6 + $0x27]]
        %v816 = vstv %s815
        %v817 = vmul.f32 %v816, %v777
        %v818 = vmul.f32 %v816, %v778
        %v821 = vrot.slane %v817, 1
        %v822 = vrot.slane %v818, 1
        %v825 = vadd.f32 %v813, %v821
        %v826 = vadd.f32 %v814, %v822
        %s827 = sld [smem:[#allocation6 + $0x30]]
        %v828 = vstv %s827
        %v829 = vmul.f32 %v828, %v777
        %v830 = vmul.f32 %v828, %v778
        %v833 = vrot.slane %v829, 2
        %v834 = vrot.slane %v830, 2
        %v837 = vadd.f32 %v825, %v833
        %v838 = vadd.f32 %v826, %v834
        %s839 = sld [smem:[#allocation6 + $0x39]]
        %v840 = vstv %s839
        %v841 = vmul.f32 %v840, %v777
        %v842 = vmul.f32 %v840, %v778
        %v843 = vadd.f32 %v755, %v841
        %v844 = vadd.f32 %v756, %v842
        %s845 = sld [smem:[#allocation6 + $0x42]]
        %v846 = vstv %s845
        %v847 = vmul.f32 %v846, %v777
        %v848 = vmul.f32 %v846, %v778
        %v851 = vrot.slane %v847, 1
        %v852 = vrot.slane %v848, 1
        %v855 = vadd.f32 %v843, %v851
        %v856 = vadd.f32 %v844, %v852
        %s857 = sld [smem:[#allocation6 + $0x4b]]
        %v858 = vstv %s857
        %v859 = vmul.f32 %v858, %v777
        %v860 = vmul.f32 %v858, %v778
        %v863 = vrot.slane %v859, 2
        %v864 = vrot.slane %v860, 2
        %v867 = vadd.f32 %v855, %v863
        %v868 = vadd.f32 %v856, %v864
        %s869 = sld [smem:[#allocation6 + $0x4]]
        %v870 = vstv %s869
        %v871 = vmul.f32 %v870, %v344
        %v873 = vlaneseq
        %v874 = vshrl.u32 %v873, 7
        %v875 = vsub.s32 0, %v874
        %v876 = vrot.slane %v871, %v875
        %v877 = vlaneseq
        %v878 = vshrl.u32 %v877, 7
        %v879 = vsub.s32 4, %v878
        %v880 = vrot.slane %v871, %v879
        %v883 = vadd.f32 %v807, %v876
        %v884 = vadd.f32 %v808, %v880
        %s885 = sld [smem:[#allocation6 + $0xd]]
        %v886 = vstv %s885
        %v887 = vmul.f32 %v886, %v344
        %v889 = vlaneseq
        %v890 = vshrl.u32 %v889, 7
        %v891 = vsub.s32 1, %v890
        %v892 = vrot.slane %v887, %v891
        %v893 = vlaneseq
        %v894 = vshrl.u32 %v893, 7
        %v895 = vsub.s32 5, %v894
        %v896 = vrot.slane %v887, %v895
        %v899 = vadd.f32 %v883, %v892
        %v900 = vadd.f32 %v884, %v896
        %s901 = sld [smem:[#allocation6 + $0x16]]
        %v902 = vstv %s901
        %v903 = vmul.f32 %v902, %v344
        %v905 = vlaneseq
        %v906 = vshrl.u32 %v905, 7
        %v907 = vsub.s32 2, %v906
        %v908 = vrot.slane %v903, %v907
        %v909 = vlaneseq
        %v910 = vshrl.u32 %v909, 7
        %v911 = vsub.s32 6, %v910
        %v912 = vrot.slane %v903, %v911
        %v915 = vadd.f32 %v899, %v908
        %v916 = vadd.f32 %v900, %v912
        %s917 = sld [smem:[#allocation6 + $0x1f]]
        %v918 = vstv %s917
        %v919 = vmul.f32 %v918, %v344
        %v921 = vlaneseq
        %v922 = vshrl.u32 %v921, 7
        %v923 = vsub.s32 0, %v922
        %v924 = vrot.slane %v919, %v923
        %v925 = vlaneseq
        %v926 = vshrl.u32 %v925, 7
        %v927 = vsub.s32 4, %v926
        %v928 = vrot.slane %v919, %v927
        %v931 = vadd.f32 %v837, %v924
        %v932 = vadd.f32 %v838, %v928
        %s933 = sld [smem:[#allocation6 + $0x28]]
        %v934 = vstv %s933
        %v935 = vmul.f32 %v934, %v344
        %v937 = vlaneseq
        %v938 = vshrl.u32 %v937, 7
        %v939 = vsub.s32 1, %v938
        %v940 = vrot.slane %v935, %v939
        %v941 = vlaneseq
        %v942 = vshrl.u32 %v941, 7
        %v943 = vsub.s32 5, %v942
        %v944 = vrot.slane %v935, %v943
        %v947 = vadd.f32 %v931, %v940
        %v948 = vadd.f32 %v932, %v944
        %s949 = sld [smem:[#allocation6 + $0x31]]
        %v950 = vstv %s949
        %v951 = vmul.f32 %v950, %v344
        %v953 = vlaneseq
        %v954 = vshrl.u32 %v953, 7
        %v955 = vsub.s32 2, %v954
        %v956 = vrot.slane %v951, %v955
        %v957 = vlaneseq
        %v958 = vshrl.u32 %v957, 7
        %v959 = vsub.s32 6, %v958
        %v960 = vrot.slane %v951, %v959
        %v963 = vadd.f32 %v947, %v956
        %v964 = vadd.f32 %v948, %v960
        %s965 = sld [smem:[#allocation6 + $0x3a]]
        %v966 = vstv %s965
        %v967 = vmul.f32 %v966, %v344
        %v969 = vlaneseq
        %v970 = vshrl.u32 %v969, 7
        %v971 = vsub.s32 0, %v970
        %v972 = vrot.slane %v967, %v971
        %v973 = vlaneseq
        %v974 = vshrl.u32 %v973, 7
        %v975 = vsub.s32 4, %v974
        %v976 = vrot.slane %v967, %v975
        %v979 = vadd.f32 %v867, %v972
        %v980 = vadd.f32 %v868, %v976
        %s981 = sld [smem:[#allocation6 + $0x43]]
        %v982 = vstv %s981
        %v983 = vmul.f32 %v982, %v344
        %v985 = vlaneseq
        %v986 = vshrl.u32 %v985, 7
        %v987 = vsub.s32 1, %v986
        %v988 = vrot.slane %v983, %v987
        %v989 = vlaneseq
        %v990 = vshrl.u32 %v989, 7
        %v991 = vsub.s32 5, %v990
        %v992 = vrot.slane %v983, %v991
        %v995 = vadd.f32 %v979, %v988
        %v996 = vadd.f32 %v980, %v992
        %s997 = sld [smem:[#allocation6 + $0x4c]]
        %v998 = vstv %s997
        %v999 = vmul.f32 %v998, %v344
        %v1001 = vlaneseq
        %v1002 = vshrl.u32 %v1001, 7
        %v1003 = vsub.s32 2, %v1002
        %v1004 = vrot.slane %v999, %v1003
        %v1005 = vlaneseq
        %v1006 = vshrl.u32 %v1005, 7
        %v1007 = vsub.s32 6, %v1006
        %v1008 = vrot.slane %v999, %v1007
        %v1011 = vadd.f32 %v995, %v1004
        %v1012 = vadd.f32 %v996, %v1008
        %1013 = vrot.lane.b32.xlu0 %v344, 127
        %v1014 = vpop.permute.xlu0 %1013
        %1015 = vrot.lane.b32.xlu0 %v418, 127
        %v1016 = vpop.permute.xlu0 %1015
        %vm1017 = vcmp.lt.s32.totalorder %v425, 127
        %v1018 = vsel %vm1017, %v1014, %v1016
        %v1019 = vsel %vm1017, %v1016, %v1014
        %s1020 = scalar_lea.vmem %s1, 5
        %v1021 = vld [vmem:[%s1020] ss:$8 sm:$0x3]
        %v1023 = vlaneseq
        %v1024 = vshrl.u32 %v1023, 7
        %v1025 = vsub.s32 0, %v1024
        %v1026 = vrot.slane %v1021, %v1025
        %v1027 = vlaneseq
        %v1028 = vshrl.u32 %v1027, 7
        %v1029 = vsub.s32 1, %v1028
        %v1030 = vrot.slane %v1021, %v1029
        %v1033 = vmul.f32 %v1018, %v1026
        %v1034 = vmul.f32 %v1019, %v1030
        %s1035 = sld [smem:[#allocation6 + $0x5]]
        %v1036 = vstv %s1035
        %v1037 = vmul.f32 %v1036, %v1033
        %v1038 = vmul.f32 %v1036, %v1034
        %v1039 = vadd.f32 %v915, %v1037
        %v1040 = vadd.f32 %v916, %v1038
        %s1041 = sld [smem:[#allocation6 + $0xe]]
        %v1042 = vstv %s1041
        %v1043 = vmul.f32 %v1042, %v1033
        %v1044 = vmul.f32 %v1042, %v1034
        %v1047 = vrot.slane %v1043, 1
        %v1048 = vrot.slane %v1044, 1
        %v1051 = vadd.f32 %v1039, %v1047
        %v1052 = vadd.f32 %v1040, %v1048
        %s1053 = sld [smem:[#allocation6 + $0x17]]
        %v1054 = vstv %s1053
        %v1055 = vmul.f32 %v1054, %v1033
        %v1056 = vmul.f32 %v1054, %v1034
        %v1059 = vrot.slane %v1055, 2
        %v1060 = vrot.slane %v1056, 2
        %v1063 = vadd.f32 %v1051, %v1059
        %v1064 = vadd.f32 %v1052, %v1060
        %s1065 = sld [smem:[#allocation6 + $0x20]]
        %v1066 = vstv %s1065
        %v1067 = vmul.f32 %v1066, %v1033
        %v1068 = vmul.f32 %v1066, %v1034
        %v1069 = vadd.f32 %v963, %v1067
        %v1070 = vadd.f32 %v964, %v1068
        %s1071 = sld [smem:[#allocation6 + $0x29]]
        %v1072 = vstv %s1071
        %v1073 = vmul.f32 %v1072, %v1033
        %v1074 = vmul.f32 %v1072, %v1034
        %v1077 = vrot.slane %v1073, 1
        %v1078 = vrot.slane %v1074, 1
        %v1081 = vadd.f32 %v1069, %v1077
        %v1082 = vadd.f32 %v1070, %v1078
        %s1083 = sld [smem:[#allocation6 + $0x32]]
        %v1084 = vstv %s1083
        %v1085 = vmul.f32 %v1084, %v1033
        %v1086 = vmul.f32 %v1084, %v1034
        %v1089 = vrot.slane %v1085, 2
        %v1090 = vrot.slane %v1086, 2
        %v1093 = vadd.f32 %v1081, %v1089
        %v1094 = vadd.f32 %v1082, %v1090
        %s1095 = sld [smem:[#allocation6 + $0x3b]]
        %v1096 = vstv %s1095
        %v1097 = vmul.f32 %v1096, %v1033
        %v1098 = vmul.f32 %v1096, %v1034
        %v1099 = vadd.f32 %v1011, %v1097
        %v1100 = vadd.f32 %v1012, %v1098
        %s1101 = sld [smem:[#allocation6 + $0x44]]
        %v1102 = vstv %s1101
        %v1103 = vmul.f32 %v1102, %v1033
        %v1104 = vmul.f32 %v1102, %v1034
        %v1107 = vrot.slane %v1103, 1
        %v1108 = vrot.slane %v1104, 1
        %v1111 = vadd.f32 %v1099, %v1107
        %v1112 = vadd.f32 %v1100, %v1108
        %s1113 = sld [smem:[#allocation6 + $0x4d]]
        %v1114 = vstv %s1113
        %v1115 = vmul.f32 %v1114, %v1033
        %v1116 = vmul.f32 %v1114, %v1034
        %v1119 = vrot.slane %v1115, 2
        %v1120 = vrot.slane %v1116, 2
        %v1123 = vadd.f32 %v1111, %v1119
        %v1124 = vadd.f32 %v1112, %v1120
        %1125 = vrot.lane.b32.xlu0 %v344, 113
        %v1126 = vpop.permute.xlu0 %1125
        %1127 = vrot.lane.b32.xlu0 %v418, 113
        %v1128 = vpop.permute.xlu0 %1127
        %vm1129 = vcmp.lt.s32.totalorder %v425, 113
        %v1130 = vsel %vm1129, %v1126, %v1128
        %v1131 = vsel %vm1129, %v1128, %v1126
        %s1132 = scalar_lea.vmem %s1, 6
        %v1133 = vld [vmem:[%s1132] ss:$8 sm:$0x3]
        %v1135 = vlaneseq
        %v1136 = vshrl.u32 %v1135, 7
        %v1137 = vsub.s32 0, %v1136
        %v1138 = vrot.slane %v1133, %v1137
        %v1139 = vlaneseq
        %v1140 = vshrl.u32 %v1139, 7
        %v1141 = vsub.s32 1, %v1140
        %v1142 = vrot.slane %v1133, %v1141
        %v1145 = vmul.f32 %v1130, %v1138
        %v1146 = vmul.f32 %v1131, %v1142
        %s1147 = sld [smem:[#allocation6 + $0x6]]
        %v1148 = vstv %s1147
        %v1149 = vmul.f32 %v1148, %v1145
        %v1150 = vmul.f32 %v1148, %v1146
        %v1151 = vadd.f32 %v1063, %v1149
        %v1152 = vadd.f32 %v1064, %v1150
        %s1153 = sld [smem:[#allocation6 + $0xf]]
        %v1154 = vstv %s1153
        %v1155 = vmul.f32 %v1154, %v1145
        %v1156 = vmul.f32 %v1154, %v1146
        %v1159 = vrot.slane %v1155, 1
        %v1160 = vrot.slane %v1156, 1
        %v1163 = vadd.f32 %v1151, %v1159
        %v1164 = vadd.f32 %v1152, %v1160
        %s1165 = sld [smem:[#allocation6 + $0x18]]
        %v1166 = vstv %s1165
        %v1167 = vmul.f32 %v1166, %v1145
        %v1168 = vmul.f32 %v1166, %v1146
        %v1171 = vrot.slane %v1167, 2
        %v1172 = vrot.slane %v1168, 2
        %v1175 = vadd.f32 %v1163, %v1171
        %v1176 = vadd.f32 %v1164, %v1172
        %s1177 = sld [smem:[#allocation6 + $0x21]]
        %v1178 = vstv %s1177
        %v1179 = vmul.f32 %v1178, %v1145
        %v1180 = vmul.f32 %v1178, %v1146
        %v1181 = vadd.f32 %v1093, %v1179
        %v1182 = vadd.f32 %v1094, %v1180
        %s1183 = sld [smem:[#allocation6 + $0x2a]]
        %v1184 = vstv %s1183
        %v1185 = vmul.f32 %v1184, %v1145
        %v1186 = vmul.f32 %v1184, %v1146
        %v1189 = vrot.slane %v1185, 1
        %v1190 = vrot.slane %v1186, 1
        %v1193 = vadd.f32 %v1181, %v1189
        %v1194 = vadd.f32 %v1182, %v1190
        %s1195 = sld [smem:[#allocation6 + $0x33]]
        %v1196 = vstv %s1195
        %v1197 = vmul.f32 %v1196, %v1145
        %v1198 = vmul.f32 %v1196, %v1146
        %v1201 = vrot.slane %v1197, 2
        %v1202 = vrot.slane %v1198, 2
        %v1205 = vadd.f32 %v1193, %v1201
        %v1206 = vadd.f32 %v1194, %v1202
        %s1207 = sld [smem:[#allocation6 + $0x3c]]
        %v1208 = vstv %s1207
        %v1209 = vmul.f32 %v1208, %v1145
        %v1210 = vmul.f32 %v1208, %v1146
        %v1211 = vadd.f32 %v1123, %v1209
        %v1212 = vadd.f32 %v1124, %v1210
        %s1213 = sld [smem:[#allocation6 + $0x45]]
        %v1214 = vstv %s1213
        %v1215 = vmul.f32 %v1214, %v1145
        %v1216 = vmul.f32 %v1214, %v1146
        %v1219 = vrot.slane %v1215, 1
        %v1220 = vrot.slane %v1216, 1
        %v1223 = vadd.f32 %v1211, %v1219
        %v1224 = vadd.f32 %v1212, %v1220
        %s1225 = sld [smem:[#allocation6 + $0x4e]]
        %v1226 = vstv %s1225
        %v1227 = vmul.f32 %v1226, %v1145
        %v1228 = vmul.f32 %v1226, %v1146
        %v1231 = vrot.slane %v1227, 2
        %v1232 = vrot.slane %v1228, 2
        %v1235 = vadd.f32 %v1223, %v1231
        %v1236 = vadd.f32 %v1224, %v1232
        %1237 = vrot.lane.b32.xlu0 %v344, 112
        %v1238 = vpop.permute.xlu0 %1237
        %1239 = vrot.lane.b32.xlu0 %v418, 112
        %v1240 = vpop.permute.xlu0 %1239
        %vm1241 = vcmp.lt.s32.totalorder %v425, 112
        %v1242 = vsel %vm1241, %v1238, %v1240
        %v1243 = vsel %vm1241, %v1240, %v1238
        %s1244 = scalar_lea.vmem %s1, 7
        %v1245 = vld [vmem:[%s1244] ss:$8 sm:$0x3]
        %v1247 = vlaneseq
        %v1248 = vshrl.u32 %v1247, 7
        %v1249 = vsub.s32 0, %v1248
        %v1250 = vrot.slane %v1245, %v1249
        %v1251 = vlaneseq
        %v1252 = vshrl.u32 %v1251, 7
        %v1253 = vsub.s32 1, %v1252
        %v1254 = vrot.slane %v1245, %v1253
        %v1257 = vmul.f32 %v1242, %v1250
        %v1258 = vmul.f32 %v1243, %v1254
        %s1259 = sld [smem:[#allocation6 + $0x7]]
        %v1260 = vstv %s1259
        %v1261 = vmul.f32 %v1260, %v1257
        %v1262 = vmul.f32 %v1260, %v1258
        %v1263 = vadd.f32 %v1175, %v1261
        %v1264 = vadd.f32 %v1176, %v1262
        %s1265 = sld [smem:[#allocation6 + $0x10]]
        %v1266 = vstv %s1265
        %v1267 = vmul.f32 %v1266, %v1257
        %v1268 = vmul.f32 %v1266, %v1258
        %v1271 = vrot.slane %v1267, 1
        %v1272 = vrot.slane %v1268, 1
        %v1275 = vadd.f32 %v1263, %v1271
        %v1276 = vadd.f32 %v1264, %v1272
        %s1277 = sld [smem:[#allocation6 + $0x19]]
        %v1278 = vstv %s1277
        %v1279 = vmul.f32 %v1278, %v1257
        %v1280 = vmul.f32 %v1278, %v1258
        %v1283 = vrot.slane %v1279, 2
        %v1284 = vrot.slane %v1280, 2
        %v1287 = vadd.f32 %v1275, %v1283
        %v1288 = vadd.f32 %v1276, %v1284
        %s1289 = sld [smem:[#allocation6 + $0x22]]
        %v1290 = vstv %s1289
        %v1291 = vmul.f32 %v1290, %v1257
        %v1292 = vmul.f32 %v1290, %v1258
        %v1293 = vadd.f32 %v1205, %v1291
        %v1294 = vadd.f32 %v1206, %v1292
        %s1295 = sld [smem:[#allocation6 + $0x2b]]
        %v1296 = vstv %s1295
        %v1297 = vmul.f32 %v1296, %v1257
        %v1298 = vmul.f32 %v1296, %v1258
        %v1301 = vrot.slane %v1297, 1
        %v1302 = vrot.slane %v1298, 1
        %v1305 = vadd.f32 %v1293, %v1301
        %v1306 = vadd.f32 %v1294, %v1302
        %s1307 = sld [smem:[#allocation6 + $0x34]]
        %v1308 = vstv %s1307
        %v1309 = vmul.f32 %v1308, %v1257
        %v1310 = vmul.f32 %v1308, %v1258
        %v1313 = vrot.slane %v1309, 2
        %v1314 = vrot.slane %v1310, 2
        %v1317 = vadd.f32 %v1305, %v1313
        %v1318 = vadd.f32 %v1306, %v1314
        %s1319 = sld [smem:[#allocation6 + $0x3d]]
        %v1320 = vstv %s1319
        %v1321 = vmul.f32 %v1320, %v1257
        %v1322 = vmul.f32 %v1320, %v1258
        %v1323 = vadd.f32 %v1235, %v1321
        %v1324 = vadd.f32 %v1236, %v1322
        %s1325 = sld [smem:[#allocation6 + $0x46]]
        %v1326 = vstv %s1325
        %v1327 = vmul.f32 %v1326, %v1257
        %v1328 = vmul.f32 %v1326, %v1258
        %v1331 = vrot.slane %v1327, 1
        %v1332 = vrot.slane %v1328, 1
        %v1335 = vadd.f32 %v1323, %v1331
        %v1336 = vadd.f32 %v1324, %v1332
        %s1337 = sld [smem:[#allocation6 + $0x4f]]
        %v1338 = vstv %s1337
        %v1339 = vmul.f32 %v1338, %v1257
        %v1340 = vmul.f32 %v1338, %v1258
        %v1343 = vrot.slane %v1339, 2
        %v1344 = vrot.slane %v1340, 2
        %v1347 = vadd.f32 %v1335, %v1343
        %v1348 = vadd.f32 %v1336, %v1344
        %1349 = vrot.lane.b32.xlu0 %v344, 111
        %v1350 = vpop.permute.xlu0 %1349
        %1351 = vrot.lane.b32.xlu0 %v418, 111
        %v1352 = vpop.permute.xlu0 %1351
        %vm1353 = vcmp.lt.s32.totalorder %v425, 111
        %v1354 = vsel %vm1353, %v1350, %v1352
        %v1355 = vsel %vm1353, %v1352, %v1350
        %s1356 = scalar_lea.vmem %s1, 16
        %v1357 = vld [vmem:[%s1356] ss:$8 sm:$0x3]
        %v1359 = vlaneseq
        %v1360 = vshrl.u32 %v1359, 7
        %v1361 = vsub.s32 0, %v1360
        %v1362 = vrot.slane %v1357, %v1361
        %v1363 = vlaneseq
        %v1364 = vshrl.u32 %v1363, 7
        %v1365 = vsub.s32 1, %v1364
        %v1366 = vrot.slane %v1357, %v1365
        %v1369 = vmul.f32 %v1354, %v1362
        %v1370 = vmul.f32 %v1355, %v1366
        %s1371 = sld [smem:[#allocation6 + $0x8]]
        %v1372 = vstv %s1371
        %v1373 = vmul.f32 %v1372, %v1369
        %v1374 = vmul.f32 %v1372, %v1370
        %v1375 = vadd.f32 %v1287, %v1373
        %v1376 = vadd.f32 %v1288, %v1374
        %s1377 = sld [smem:[#allocation6 + $0x11]]
        %v1378 = vstv %s1377
        %v1379 = vmul.f32 %v1378, %v1369
        %v1380 = vmul.f32 %v1378, %v1370
        %v1383 = vrot.slane %v1379, 1
        %v1384 = vrot.slane %v1380, 1
        %v1387 = vadd.f32 %v1375, %v1383
        %v1388 = vadd.f32 %v1376, %v1384
        %s1389 = sld [smem:[#allocation6 + $0x1a]]
        %v1390 = vstv %s1389
        %v1391 = vmul.f32 %v1390, %v1369
        %v1392 = vmul.f32 %v1390, %v1370
        %v1395 = vrot.slane %v1391, 2
        %v1396 = vrot.slane %v1392, 2
        %v1399 = vadd.f32 %v1387, %v1395
        %v1400 = vadd.f32 %v1388, %v1396
        %s1401 = sld [smem:[#allocation6 + $0x23]]
        %v1402 = vstv %s1401
        %v1403 = vmul.f32 %v1402, %v1369
        %v1404 = vmul.f32 %v1402, %v1370
        %v1405 = vadd.f32 %v1317, %v1403
        %v1406 = vadd.f32 %v1318, %v1404
        %s1407 = sld [smem:[#allocation6 + $0x2c]]
        %v1408 = vstv %s1407
        %v1409 = vmul.f32 %v1408, %v1369
        %v1410 = vmul.f32 %v1408, %v1370
        %v1413 = vrot.slane %v1409, 1
        %v1414 = vrot.slane %v1410, 1
        %v1417 = vadd.f32 %v1405, %v1413
        %v1418 = vadd.f32 %v1406, %v1414
        %s1419 = sld [smem:[#allocation6 + $0x35]]
        %v1420 = vstv %s1419
        %v1421 = vmul.f32 %v1420, %v1369
        %v1422 = vmul.f32 %v1420, %v1370
        %v1425 = vrot.slane %v1421, 2
        %v1426 = vrot.slane %v1422, 2
        %v1429 = vadd.f32 %v1417, %v1425
        %v1430 = vadd.f32 %v1418, %v1426
        %s1431 = sld [smem:[#allocation6 + $0x3e]]
        %v1432 = vstv %s1431
        %v1433 = vmul.f32 %v1432, %v1369
        %v1434 = vmul.f32 %v1432, %v1370
        %v1435 = vadd.f32 %v1347, %v1433
        %v1436 = vadd.f32 %v1348, %v1434
        %s1437 = sld [smem:[#allocation6 + $0x47]]
        %v1438 = vstv %s1437
        %v1439 = vmul.f32 %v1438, %v1369
        %v1440 = vmul.f32 %v1438, %v1370
        %v1443 = vrot.slane %v1439, 1
        %v1444 = vrot.slane %v1440, 1
        %v1447 = vadd.f32 %v1435, %v1443
        %v1448 = vadd.f32 %v1436, %v1444
        %s1449 = sld [smem:[#allocation6 + $0x50]]
        %v1450 = vstv %s1449
        %v1451 = vmul.f32 %v1450, %v1369
        %v1452 = vmul.f32 %v1450, %v1370
        %v1455 = vrot.slane %v1451, 2
        %v1456 = vrot.slane %v1452, 2
        %v1459 = vadd.f32 %v1447, %v1455
        %v1460 = vadd.f32 %v1448, %v1456
        %v1462 = vlaneseq
        %v1463 = vshrl.u32 %v1462, 7
        %v1464 = vsub.s32 0, %v1463
        %v1465 = vrot.slane %v376, %v1464
        %v1466 = vlaneseq
        %v1467 = vshrl.u32 %v1466, 7
        %v1468 = vsub.s32 4, %v1467
        %v1469 = vrot.slane %v376, %v1468
        %v1473 = vlaneseq
        %v1474 = vshrl.u32 %v1473, 7
        %v1475 = vsub.s32 0, %v1474
        %v1476 = vrot.slane %v396, %v1475
        %v1477 = vlaneseq
        %v1478 = vshrl.u32 %v1477, 7
        %v1479 = vsub.s32 4, %v1478
        %v1480 = vrot.slane %v396, %v1479
        %v1484 = vlaneseq
        %v1485 = vshrl.u32 %v1484, 7
        %v1486 = vsub.s32 0, %v1485
        %v1487 = vrot.slane %v416, %v1486
        %v1488 = vlaneseq
        %v1489 = vshrl.u32 %v1488, 7
        %v1490 = vsub.s32 4, %v1489
        %v1491 = vrot.slane %v416, %v1490
        %vm1494 = vcmask 1040384
        %v1495 = vsel %vm1494, %v1465, %v1476
        %v1496 = vsel %vm1494, %v1469, %v1480
        %vm1497 = vcmask 1041408
        %v1498 = vsel %vm1497, %v1495, %v1487
        %v1499 = vsel %vm1497, %v1496, %v1491
        %v1502 = vcombine.low %v1498, %v1499
        %1504 = vst [vmem:[%s338] sm:$0x77] %v1502
        %v1507 = vrot.slane %v1429, 7
        %v1508 = vrot.slane %v1430, 7
        %v1513 = vrot.slane %v1459, 6
        %v1514 = vrot.slane %v1460, 6
        %v1517 = vsel %vm1494, %v1399, %v1507
        %v1518 = vsel %vm1494, %v1400, %v1508
        %v1519 = vsel %vm1497, %v1517, %v1513
        %v1520 = vsel %vm1497, %v1518, %v1514
        %v1523 = vcombine.low %v1519, %v1520
        %1525 = vst [vmem:[%s343] sm:$0x77] %v1523
        %p1526 = scmp.lt.s32.totalorder %s22, 1
        %s1527 = scalar_select %p1526, %s22, 1
        %s1528 = smul.addr %s1527, 2
        %s1529 = smul.addr %s1528, 4
        %s1530 = scalar_lea.vmem %s6, %s1529
        %p1531 = scmp.lt.s32.totalorder %s22, 1
        %s1532 = scalar_select %p1531, %s22, 1
        %s1533 = smul.addr %s1532, 2
        %s1534 = smul.addr %s1533, 4
        %s1535 = scalar_lea.vmem %s7, %s1534
        // Predicated region
        $region61: #{edge_detection_forward.1} parent=43 // pred_check
          %p1536 = pneg %p171
        $region62: #{edge_detection_forward.1} parent=43 // pred_check_branch
          %1538 = sbr.rel (%p1536) target = $region64
        $region63: #{edge_detection_forward.1} parent=43 // pred_region
          _
        $region64: #{edge_detection_forward.1} parent=43 // pred_fallthru
          _
        // Predicated region
        $region65: #{edge_detection_forward.1} parent=43 // pred_check
          %p1539 = pneg %p197
        $region66: #{edge_detection_forward.1} parent=43 // pred_check_branch
          %1541 = sbr.rel (%p1539) target = $region68
        $region67: #{edge_detection_forward.1} parent=43 // pred_region
          _
        $region68: #{edge_detection_forward.1} parent=43 // pred_fallthru
          _
      $region44: #{edge_detection_forward.1} parent=5 // pred_fallthru
        _
      %p1542 = scmp.le.s32.totalorder 2, %s17
      // Predicated region
      $region69: #{edge_detection_forward.1} parent=5 // pred_check
        %p1543 = pneg %p1542
      $region70: #{edge_detection_forward.1} parent=5 // pred_check_branch
        %1545 = sbr.rel (%p1543) target = $region72
      $region71: #{edge_detection_forward.1} parent=5 // pred_region
        %s1546 = ssub.s32 %s17, 2
        // Predicated region
        $region73: #{edge_detection_forward.1} parent=71 // pred_check
          %p1547 = pneg %p177
        $region74: #{edge_detection_forward.1} parent=71 // pred_check_branch
          %1549 = sbr.rel (%p1547) target = $region76
        $region75: #{edge_detection_forward.1} parent=71 // pred_region
          %p1550 = scmp.lt.s32.totalorder %s23, 1
          %s1551 = scalar_select %p1550, %s23, 1
          %s1552 = smul.addr %s1551, 2
          %s1553 = smul.addr %s1552, 4
          %s1554 = scalar_lea.vmem %s6, %s1553
        $region76: #{edge_detection_forward.1} parent=71 // pred_fallthru
          _
        // Predicated region
        $region77: #{edge_detection_forward.1} parent=71 // pred_check
          %p1555 = pneg %p203
        $region78: #{edge_detection_forward.1} parent=71 // pred_check_branch
          %1557 = sbr.rel (%p1555) target = $region80
        $region79: #{edge_detection_forward.1} parent=71 // pred_region
          %p1558 = scmp.lt.s32.totalorder %s23, 1
          %s1559 = scalar_select %p1558, %s23, 1
          %s1560 = smul.addr %s1559, 2
          %s1561 = smul.addr %s1560, 4
          %s1562 = scalar_lea.vmem %s7, %s1561
        $region80: #{edge_detection_forward.1} parent=71 // pred_fallthru
          _
      $region72: #{edge_detection_forward.1} parent=5 // pred_fallthru
        _
    $region6: #{edge_detection_forward.1} parent=1 // loop_footer
      %s21 = sadd.s32 1, %s17
    $region7: #{edge_detection_forward.1} parent=1 // loop_footer_branch
      %16 = sbr.rel target = $region3
    $region8: #{edge_detection_forward.1} parent=1 // loop_exit
      _
    %1563 = vsyncpa [#allocation3], 1
    %s1564 = scalar_lea.sflag [#allocation3], 1
    %1565 = vsyncpa %s1564, 1
    %1566 = vsyncpa [#allocation5], 1
    %1567 = vsyncpa [#allocation8], 1

</llo_original>
